<compile_context>
chip_gen: v6e
topology: v6e:2x2x1
jax: 0.10.0
libtpu: 0.0.40
codegen_flags: <defaults>
</compile_context>

<pallas_src>
from functools import partial, lru_cache

import jax
import jax.numpy as jnp
from jax import lax
from jax.experimental import pallas as pl
from jax.experimental.pallas import tpu as pltpu

TIMESTEPS = 100    # self.timesteps
K_BUCKETS = 4      # self.k
W_BITS = 8         # weight_quant_params n_bits
A_BITS = 8         # act_quant_params n_bits (sm_abit = 8)
KERNEL_SIZE = 3    # conv kernel
PAD = 1
LANE = 128
SUBLANE = 8


def _round_up(x, m):
    return (x + m - 1) // m * m


@lru_cache(maxsize=1)
def _default_conv_m_tiles():
    """2-way M split only where it maps to two TensorCores (v7x); on v5e/v6e a
    split is pure grid-step overhead (one TC per chip)."""
    try:
        kind = jax.devices()[0].device_kind.lower()
    except Exception:
        return 2
    if any(s in kind for s in ("v5e", "v5 lite", "v5lite", "v6e", "v6 lite", "v6lite")):
        return 1
    return 2


# ----------------------------------------------------------------------------
# Pallas kernel: (optionally pre-)quantized activations x int8 weights,
# bf16 MXU, f32 accumulation, dequant + bias (+ ReLU) (+ re-quant) epilogue.
# ----------------------------------------------------------------------------
def _qmm_kernel(x_ref, w_ref, b_ref, s_ref, scal_ref, o_ref, *,
                x_prequant, apply_relu, out_requant, n_bits=A_BITS):
    """One (tm, Np) output tile; K is a single full block (no reduction axis).

    x_ref    (tm, K)  f32 raw activations OR int8 already on the int grid
    w_ref    (K, Np)  int8 weights on the int grid (pre-quantized at prepare)
    b_ref    (1, Np)  f32  bias
    s_ref    (1, Np)  f32  epilogue scale = a_scale_in * w_scale (per out col)
    scal_ref (2,)     f32  SMEM: [1/a_scale_in, 1/a_scale_out]
    o_ref    (tm, Np) f32, or int8 when the next layer's act-quant is fused in
    """
    qmax = float(2 ** (n_bits - 1) - 1)
    qmin = float(-(2 ** (n_bits - 1)))   # NOTE: [-128, 127]; matches the
                                         # original module's symmetric quant.

    if x_prequant:
        # Activations already live on the int grid (produced by the previous
        # layer's fused epilogue) -> just upcast int8 -> bf16 (VPU cast).
        xq = x_ref[...].astype(jnp.bfloat16)
    else:
        # Activation fake-quant onto the integer grid (reciprocal multiply).
        inv_in = scal_ref[0]
        xq = jnp.clip(jnp.round(x_ref[...] * inv_in), qmin, qmax).astype(jnp.bfloat16)

    # int8 -> bf16 upcast of the weights (integers |q| <= 128 are exact in bf16
    # and their products are exact in the f32 MXU accumulator).
    # TODO(synk): on v5e/v6e a native int8 MXU path (int8 operands,
    # preferred_element_type=int32) would double matmul throughput; kept on the
    # portable bf16 path here (v7x has no integer MXU).
    wq = w_ref[...].astype(jnp.bfloat16)
    acc = jnp.dot(xq, wq, preferred_element_type=jnp.float32)

    y = acc * s_ref[...] + b_ref[...]
    if apply_relu:
        y = jnp.maximum(y, 0.0)          # fused epilogue ReLU (free VPU slot)

    if out_requant:
        # Fuse the NEXT layer's activation fake-quant: store int8 on its grid.
        q = jnp.clip(jnp.round(y * scal_ref[1]), qmin, qmax)
        o_ref[...] = q.astype(jnp.int8)
    else:
        o_ref[...] = y.astype(o_ref.dtype)


def quant_matmul(x, w_q, bias, w_scale, a_scale_in, *, a_scale_out=None,
                 x_prequant=False, apply_relu=False, out_requant=False,
                 n_valid_out=None, m_tiles=1):
    """Quantized matmul (+bias, +ReLU, + optional fused output re-quant).

    x:        (M, K)  f32 raw activations, or int8 on the int grid (x_prequant)
    w_q:      (K, Np) int8 weights on the int grid
    bias:     (Np,)   f32
    w_scale:  (Np,)   f32 per-output-channel weight scale
    a_scale_in:  scalar f32 per-timestep-bucket activation scale of this layer
    a_scale_out: scalar f32 activation scale of the NEXT layer (out_requant)
    Returns (M, n_valid_out) f32, or int8 on the next layer's grid.
    """
    M, K = x.shape
    Kw, Np = w_q.shape
    assert Kw == K

    Mp = _round_up(M, SUBLANE)
    if Mp != M:
        x = jnp.pad(x, ((0, Mp - M), (0, 0)))

    tm = Mp
    if m_tiles > 1 and Mp % (m_tiles * SUBLANE) == 0:
        tm = Mp // m_tiles
    grid = (Mp // tm,)          # single N block, single full-K block

    a_in = jnp.asarray(a_scale_in, jnp.float32)
    out_scale = (a_in * w_scale.astype(jnp.float32)).reshape(1, Np)
    bias2 = bias.reshape(1, Np).astype(jnp.float32)

    inv_in = jnp.float32(1.0) if x_prequant else (1.0 / a_in)
    inv_out = (1.0 / jnp.asarray(a_scale_out, jnp.float32)) if out_requant \
        else jnp.float32(1.0)
    scal = jnp.stack([jnp.asarray(inv_in, jnp.float32),
                      jnp.asarray(inv_out, jnp.float32)])   # (2,) f32 -> SMEM

    out_dtype = jnp.int8 if out_requant else jnp.float32

    out = pl.pallas_call(
        partial(_qmm_kernel, x_prequant=x_prequant, apply_relu=apply_relu,
                out_requant=out_requant),
        out_shape=jax.ShapeDtypeStruct((Mp, Np), out_dtype),
        grid=grid,
        in_specs=[
            pl.BlockSpec((tm, K), lambda i: (i, 0)),     # activations
            pl.BlockSpec((K, Np), lambda i: (0, 0)),     # int8 weights (VMEM-resident)
            pl.BlockSpec((1, Np), lambda i: (0, 0)),     # bias
            pl.BlockSpec((1, Np), lambda i: (0, 0)),     # epilogue scale
            pl.BlockSpec(memory_space=pltpu.MemorySpace.SMEM),  # [1/sa_in, 1/sa_out]
        ],
        out_specs=pl.BlockSpec((tm, Np), lambda i: (i, 0)),
        compiler_params=pltpu.CompilerParams(
            # M "parallel" (only splits when m_tiles>1, i.e. v7x's two TCs).
            dimension_semantics=("parallel",),
            # Footprint is << 1 MiB at these sizes; 32 MiB is inside every
            # generation's scoped VMEM (v7x: 64 MiB physical / 32 MiB scoped).
            vmem_limit_bytes=32 * 1024 * 1024,
        ),
    )(x, w_q, bias2, out_scale, scal)

    out = out[:M]
    if n_valid_out is not None and n_valid_out != Np:
        out = out[:, :n_valid_out]
    return out


# ----------------------------------------------------------------------------
# Prepare step: weight fake-quant (timestep independent), layout permutation,
# lane padding of the classifier head — all done once outside forward.
# ----------------------------------------------------------------------------
def _quantize_weight_int8(w_kn, w_scale, n_bits=W_BITS):
    qmax = float(2 ** (n_bits - 1) - 1)
    qmin = float(-(2 ** (n_bits - 1)))
    return jnp.clip(jnp.round(w_kn / w_scale[None, :]), qmin, qmax).astype(jnp.int8)


def prepare_quant_layers(params, H, W):
    conv_w = params["conv_w"]                         # (O, C, kh, kw)
    O, C, kh, kw = conv_w.shape
    # (ki, kj, c)-major im2col ordering (NHWC); output dim is NOT padded — the
    # conv writes only its valid channels (tiny int8 intermediate).
    w_mat = conv_w.transpose(2, 3, 1, 0).reshape(kh * kw * C, O)
    conv_w_q = _quantize_weight_int8(w_mat, params["conv_w_scale"])

    lin_w = params["lin_w"]                           # (n_cls, O*H*W) NCHW flat
    n_cls = lin_w.shape[0]
    # Permute the Linear's input columns once so the NHWC conv output can be
    # flattened directly (no NCHW transpose between the two layers).
    lin_w_nhwc = lin_w.reshape(n_cls, O, H, W).transpose(0, 2, 3, 1).reshape(n_cls, -1)
    lin_w_q = _quantize_weight_int8(lin_w_nhwc.T, params["lin_w_scale"])

    n_pad = _round_up(n_cls, LANE)                    # lane-dense classifier head
    lin_w_q = jnp.pad(lin_w_q, ((0, 0), (0, n_pad - n_cls)))
    lin_b = jnp.pad(params["lin_b"], (0, n_pad - n_cls))
    lin_s = jnp.pad(params["lin_w_scale"], (0, n_pad - n_cls), constant_values=1.0)

    return dict(
        conv=dict(w_q=conv_w_q, bias=params["conv_b"].astype(jnp.float32),
                  w_scale=params["conv_w_scale"].astype(jnp.float32),
                  a_scales=params["conv_a_scales"].astype(jnp.float32)),
        lin=dict(w_q=lin_w_q, bias=lin_b.astype(jnp.float32),
                 w_scale=lin_s.astype(jnp.float32),
                 a_scales=params["lin_a_scales"].astype(jnp.float32)),
    )


# ----------------------------------------------------------------------------
# Quantized model forward (mirrors the refactored PyTorch model)
# ----------------------------------------------------------------------------
def timestep_bucket(t):
    return (t * K_BUCKETS) // TIMESTEPS


def _im2col_nhwc(x_nhwc, kh, kw, pad):
    # TODO(synk): at real model sizes fuse im2col into the kernel (shifted-slice
    # accumulation or (ki,kj) grid axes) instead of materializing 9x copies.
    N, H, W, C = x_nhwc.shape
    xp = jnp.pad(x_nhwc, ((0, 0), (pad, pad), (pad, pad), (0, 0)))
    cols = jnp.concatenate(
        [xp[:, i:i + H, j:j + W, :] for i in range(kh) for j in range(kw)],
        axis=-1)                                      # (N, H, W, kh*kw*C)
    return cols.reshape(N * H * W, kh * kw * C)


@partial(jax.jit, static_argnames=("n_conv_out", "n_classes", "conv_m_tiles"))
def quant_model_forward(x_nchw, qlayers, timestep, *, n_conv_out, n_classes,
                        conv_m_tiles=1):
    """x_nchw: (N, C, H, W) f32 (PyTorch convention)."""
    bucket = timestep_bucket(timestep)
    N, C, H, W = x_nchw.shape

    conv, lin = qlayers["conv"], qlayers["lin"]
    sa1 = conv["a_scales"][bucket]
    sa2 = lin["a_scales"][bucket]

    # ---- layer 1: quantized Conv2d as NHWC im2col + quant matmul.  ReLU and
    # layer-2's activation fake-quant are fused into the epilogue, and only the
    # valid output channels are written, as int8 on layer-2's grid (4 KiB
    # intermediate instead of a 256 KiB padded f32 slab).
    x_nhwc = jnp.transpose(x_nchw, (0, 2, 3, 1))
    x_cols = _im2col_nhwc(x_nhwc, KERNEL_SIZE, KERNEL_SIZE, PAD)   # (N*H*W, 9C)
    y_q = quant_matmul(x_cols, conv["w_q"], conv["bias"], conv["w_scale"], sa1,
                       a_scale_out=sa2, apply_relu=True, out_requant=True,
                       n_valid_out=n_conv_out, m_tiles=conv_m_tiles)  # int8 (N*H*W, O)

    # ---- layer 2: quantized Linear on the NHWC flatten (weight columns were
    # permuted at prepare time -> no layout shuffle between the layers).  Its
    # input is already on the int grid, so the kernel only upcasts + matmuls.
    xf2 = y_q.reshape(N, H * W * n_conv_out)                       # int8 (N, 2048)
    out = quant_matmul(xf2, lin["w_q"], lin["bias"], lin["w_scale"], sa2,
                       x_prequant=True, apply_relu=False,
                       n_valid_out=n_classes, m_tiles=1)           # (N, n_cls)
    return out

    # TODO(synk): full conv+linear fusion (intermediate kept in VMEM) would need
    # an in-kernel (M, O)->(N, H*W*O) relayout; skipped — the int8 intermediate
    # already reduces the HBM round-trip to ~4 KiB.


# ----------------------------------------------------------------------------
# Pure-JAX reference (for correctness check of the Pallas path)
# ----------------------------------------------------------------------------
def _fake_quant_act(v, scale, n_bits):
    qmax = 2 ** (n_bits - 1) - 1
    qmin = -(2 ** (n_bits - 1))
    inv = 1.0 / scale                    # same reciprocal form as the kernel
    return jnp.clip(jnp.round(v * inv), qmin, qmax) * scale


def _fake_quant_weight(v, scale, n_bits):
    qmax = 2 ** (n_bits - 1) - 1
    qmin = -(2 ** (n_bits - 1))
    return jnp.clip(jnp.round(v / scale), qmin, qmax) * scale


def reference_forward(x, params, timestep):
    bucket = timestep_bucket(timestep)
    xq = _fake_quant_act(x, params["conv_a_scales"][bucket], A_BITS)
    wq = _fake_quant_weight(params["conv_w"],
                            params["conv_w_scale"][:, None, None, None], W_BITS)
    y = lax.conv_general_dilated(
        xq, wq, window_strides=(1, 1), padding=((1, 1), (1, 1)),
        dimension_numbers=("NCHW", "OIHW", "NCHW"),
        precision=lax.Precision.HIGHEST)
    y = y + params["conv_b"][None, :, None, None]
    y = jnp.maximum(y, 0.0)
    yf = y.reshape(y.shape[0], -1)
    yq = _fake_quant_act(yf, params["lin_a_scales"][bucket], A_BITS)
    wq2 = _fake_quant_weight(params["lin_w"], params["lin_w_scale"][:, None],
                             W_BITS)
    return jnp.dot(yq, wq2.T, precision=lax.Precision.HIGHEST) + params["lin_b"]


# ----------------------------------------------------------------------------
# Deterministic parameter / calibration construction
# ----------------------------------------------------------------------------
def build_params(key, in_ch=4, out_ch=8, H=16, W=16, n_classes=10):
    k1, k2, k3, k4 = jax.random.split(key, 4)
    conv_w = jax.random.normal(k1, (out_ch, in_ch, 3, 3), jnp.float32) * 0.1
    conv_b = jax.random.normal(k2, (out_ch,), jnp.float32) * 0.05
    lin_in = out_ch * H * W
    lin_w = jax.random.normal(k3, (n_classes, lin_in), jnp.float32) * 0.02
    lin_b = jax.random.normal(k4, (n_classes,), jnp.float32) * 0.05

    qmax_w = 2 ** (W_BITS - 1) - 1
    eps = 1e-8  # guard against all-zero channels -> zero scale -> inf/NaN
    conv_w_scale = jnp.maximum(
        jnp.max(jnp.abs(conv_w.reshape(out_ch, -1)), axis=1) / qmax_w, eps)
    lin_w_scale = jnp.maximum(jnp.max(jnp.abs(lin_w), axis=1) / qmax_w, eps)

    # per-timestep-bucket activation scales (synthetic deterministic calibration)
    buckets = jnp.arange(K_BUCKETS, dtype=jnp.float32)
    conv_a_scales = 0.03 * (1.0 + 0.1 * buckets)
    lin_a_scales = 0.02 * (1.0 + 0.1 * buckets)

    return dict(conv_w=conv_w, conv_b=conv_b, conv_w_scale=conv_w_scale,
                conv_a_scales=conv_a_scales,
                lin_w=lin_w, lin_b=lin_b, lin_w_scale=lin_w_scale,
                lin_a_scales=lin_a_scales)


if __name__ == "__main__":
    key = jax.random.PRNGKey(0)
    kx, kp = jax.random.split(key)
    x = jax.random.normal(kx, (2, 4, 16, 16), jnp.float32)   # NCHW
    params = build_params(kp)
    qlayers = prepare_quant_layers(params, H=16, W=16)

    current_timestep = 37   # set_current_timestep(37) -> bucket 1 of k=4
    conv_m_tiles = _default_conv_m_tiles()

    out = quant_model_forward(x, qlayers, current_timestep,
                              n_conv_out=8, n_classes=10,
                              conv_m_tiles=conv_m_tiles)
    out = jax.block_until_ready(out)
    assert out.shape == (2, 10)

    ref = reference_forward(x, params, current_timestep)
    err = jnp.abs(out - ref)
    max_err, mean_err = float(jnp.max(err)), float(jnp.mean(err))
    # Fake-quant is discontinuous: an O(1e-6) accumulation-order difference in
    # the conv output can push an element across a rounding boundary of layer
    # 2's fake-quant and change it by one quantization step; the bounds below
    # allow for a couple of such flips while still catching real bugs
    # (outputs are O(0.5)).
    assert max_err < 5e-3 and mean_err < 1e-3, (max_err, mean_err)

    # TODO(synk): set_use_quant(False) bypass path (plain fp matmul) not wired
    # into the kernel; only the quantized forward is implemented.
    print("KERNEL_OK")
</pallas_src>

<mosaic_0001>
module attributes {stable_mosaic.version = 11 : i64} {
  func.func @_qmm_kernel(%arg0: i32, %arg1: memref<256x36xf32, #tpu.memory_space<vmem>>, %arg2: memref<36x8xi8, #tpu.memory_space<vmem>>, %arg3: memref<1x8xf32, #tpu.memory_space<vmem>>, %arg4: memref<1x8xf32, #tpu.memory_space<vmem>>, %arg5: memref<2xf32, #tpu.memory_space<smem>>, %arg6: memref<256x8xi8, #tpu.memory_space<vmem>>) attributes {dimension_semantics = [#tpu.dimension_semantics<parallel>], iteration_bounds = array<i64: 2>, scalar_prefetch = 0 : i64, scratch_operands = 0 : i64, tpu.core_type = #tpu.core_type<tc>, window_params = [{transform_indices = @transform_0, window_bounds = array<i64: 256, 36>}, {pipeline_mode = #tpu.pipeline_mode<synchronous>, transform_indices = @transform_1, window_bounds = array<i64: 36, 8>}, {pipeline_mode = #tpu.pipeline_mode<synchronous>, transform_indices = @transform_2, window_bounds = array<i64: 1, 8>}, {pipeline_mode = #tpu.pipeline_mode<synchronous>, transform_indices = @transform_3, window_bounds = array<i64: 1, 8>}, {transform_indices = @transform_4, window_bounds = array<i64: 2>}, {transform_indices = @transform_5, window_bounds = array<i64: 256, 8>}]} {
    %c0 = arith.constant 0 : index
    %0 = memref.load %arg5[%c0] : memref<2xf32, #tpu.memory_space<smem>>
    %c0_0 = arith.constant 0 : index
    %c0_1 = arith.constant 0 : index
    %1 = vector.load %arg1[%c0_0, %c0_1] : memref<256x36xf32, #tpu.memory_space<vmem>>, vector<256x36xf32>
    %2 = vector.broadcast %0 : f32 to vector<256x36xf32>
    %3 = arith.mulf %1, %2 : vector<256x36xf32>
    %4 = math.roundeven %3 : vector<256x36xf32>
    %cst = arith.constant -1.280000e+02 : f32
    %cst_2 = arith.constant 1.270000e+02 : f32
    %5 = vector.broadcast %cst : f32 to vector<256x36xf32>
    %6 = arith.maximumf %5, %4 : vector<256x36xf32>
    %7 = vector.broadcast %cst_2 : f32 to vector<256x36xf32>
    %8 = arith.minimumf %7, %6 : vector<256x36xf32>
    %9 = arith.truncf %8 : vector<256x36xf32> to vector<256x36xbf16>
    %c0_3 = arith.constant 0 : index
    %c0_4 = arith.constant 0 : index
    %10 = vector.load %arg2[%c0_3, %c0_4] : memref<36x8xi8, #tpu.memory_space<vmem>>, vector<36x8xi8>
    %11 = arith.sitofp %10 : vector<36x8xi8> to vector<36x8xbf16>
    %cst_5 = arith.constant dense<0.000000e+00> : vector<256x8xf32>
    %12 = tpu.matmul %9, %11, %cst_5 {dimension_numbers = #tpu.dot_dimension_numbers<[1], [0], [0], [1], [0, 0, 1, 1], [], []>} : vector<256x36xbf16>, vector<36x8xbf16>, vector<256x8xf32> -> vector<256x8xf32>
    %c0_6 = arith.constant 0 : index
    %c0_7 = arith.constant 0 : index
    %13 = vector.load %arg4[%c0_6, %c0_7] : memref<1x8xf32, #tpu.memory_space<vmem>>, vector<1x8xf32>
    %14 = vector.broadcast %13 : vector<1x8xf32> to vector<256x8xf32>
    %15 = arith.mulf %12, %14 : vector<256x8xf32>
    %c0_8 = arith.constant 0 : index
    %c0_9 = arith.constant 0 : index
    %16 = vector.load %arg3[%c0_8, %c0_9] : memref<1x8xf32, #tpu.memory_space<vmem>>, vector<1x8xf32>
    %17 = vector.broadcast %16 : vector<1x8xf32> to vector<256x8xf32>
    %18 = arith.addf %15, %17 : vector<256x8xf32>
    %cst_10 = arith.constant 0.000000e+00 : f32
    %19 = vector.broadcast %cst_10 : f32 to vector<256x8xf32>
    %20 = arith.maximumf %18, %19 : vector<256x8xf32>
    %c1 = arith.constant 1 : index
    %21 = memref.load %arg5[%c1] : memref<2xf32, #tpu.memory_space<smem>>
    %22 = vector.broadcast %21 : f32 to vector<256x8xf32>
    %23 = arith.mulf %20, %22 : vector<256x8xf32>
    %24 = math.roundeven %23 : vector<256x8xf32>
    %cst_11 = arith.constant -1.280000e+02 : f32
    %cst_12 = arith.constant 1.270000e+02 : f32
    %25 = vector.broadcast %cst_11 : f32 to vector<256x8xf32>
    %26 = arith.maximumf %25, %24 : vector<256x8xf32>
    %27 = vector.broadcast %cst_12 : f32 to vector<256x8xf32>
    %28 = arith.minimumf %27, %26 : vector<256x8xf32>
    %29 = arith.fptosi %28 : vector<256x8xf32> to vector<256x8xi8>
    %c0_13 = arith.constant 0 : index
    %c0_14 = arith.constant 0 : index
    %30 = vector.load %arg6[%c0_13, %c0_14] : memref<256x8xi8, #tpu.memory_space<vmem>>, vector<256x8xi8>
    tpu.vector_store %arg6[%c0_13, %c0_14], %29 {strides = array<i32>} : memref<256x8xi8, #tpu.memory_space<vmem>>, vector<256x8xi8>,
    return
  }
  func.func @transform_0(%arg0: i32) -> (i32, i32) {
    %c0_i32 = arith.constant 0 : i32
    %c0_i32_0 = arith.constant 0 : i32
    return %arg0, %c0_i32 : i32, i32
  }
  func.func @transform_1(%arg0: i32) -> (i32, i32) {
    %c0_i32 = arith.constant 0 : i32
    %c0_i32_0 = arith.constant 0 : i32
    %c0_i32_1 = arith.constant 0 : i32
    return %c0_i32, %c0_i32_0 : i32, i32
  }
  func.func @transform_2(%arg0: i32) -> (i32, i32) {
    %c0_i32 = arith.constant 0 : i32
    %c0_i32_0 = arith.constant 0 : i32
    %c0_i32_1 = arith.constant 0 : i32
    return %c0_i32, %c0_i32_0 : i32, i32
  }
  func.func @transform_3(%arg0: i32) -> (i32, i32) {
    %c0_i32 = arith.constant 0 : i32
    %c0_i32_0 = arith.constant 0 : i32
    %c0_i32_1 = arith.constant 0 : i32
    return %c0_i32, %c0_i32_0 : i32, i32
  }
  func.func @transform_4(%arg0: i32) -> i32 {
    %c0_i32 = arith.constant 0 : i32
    %c0_i32_0 = arith.constant 0 : i32
    return %c0_i32 : i32
  }
  func.func @transform_5(%arg0: i32) -> (i32, i32) {
    %c0_i32 = arith.constant 0 : i32
    %c0_i32_0 = arith.constant 0 : i32
    return %arg0, %c0_i32 : i32, i32
  }
}

module attributes {stable_mosaic.version = 11 : i64} {
  func.func @_qmm_kernel(%arg0: i32, %arg1: memref<8x2048xi8, #tpu.memory_space<vmem>>, %arg2: memref<2048x128xi8, #tpu.memory_space<vmem>>, %arg3: memref<1x128xf32, #tpu.memory_space<vmem>>, %arg4: memref<1x128xf32, #tpu.memory_space<vmem>>, %arg5: memref<2xf32, #tpu.memory_space<smem>>, %arg6: memref<8x128xf32, #tpu.memory_space<vmem>>) attributes {dimension_semantics = [#tpu.dimension_semantics<parallel>], iteration_bounds = array<i64: 1>, scalar_prefetch = 0 : i64, scratch_operands = 0 : i64, tpu.core_type = #tpu.core_type<tc>, window_params = [{transform_indices = @transform_0, window_bounds = array<i64: 8, 2048>}, {pipeline_mode = #tpu.pipeline_mode<synchronous>, transform_indices = @transform_1, window_bounds = array<i64: 2048, 128>}, {pipeline_mode = #tpu.pipeline_mode<synchronous>, transform_indices = @transform_2, window_bounds = array<i64: 1, 128>}, {pipeline_mode = #tpu.pipeline_mode<synchronous>, transform_indices = @transform_3, window_bounds = array<i64: 1, 128>}, {transform_indices = @transform_4, window_bounds = array<i64: 2>}, {transform_indices = @transform_5, window_bounds = array<i64: 8, 128>}]} {
    %c0 = arith.constant 0 : index
    %c0_0 = arith.constant 0 : index
    %0 = vector.load %arg1[%c0, %c0_0] : memref<8x2048xi8, #tpu.memory_space<vmem>>, vector<8x2048xi8>
    %1 = arith.sitofp %0 : vector<8x2048xi8> to vector<8x2048xbf16>
    %c0_1 = arith.constant 0 : index
    %c0_2 = arith.constant 0 : index
    %2 = vector.load %arg2[%c0_1, %c0_2] : memref<2048x128xi8, #tpu.memory_space<vmem>>, vector<2048x128xi8>
    %3 = arith.sitofp %2 : vector<2048x128xi8> to vector<2048x128xbf16>
    %cst = arith.constant dense<0.000000e+00> : vector<8x128xf32>
    %4 = tpu.matmul %1, %3, %cst {dimension_numbers = #tpu.dot_dimension_numbers<[1], [0], [0], [1], [0, 0, 1, 1], [], []>} : vector<8x2048xbf16>, vector<2048x128xbf16>, vector<8x128xf32> -> vector<8x128xf32>
    %c0_3 = arith.constant 0 : index
    %c0_4 = arith.constant 0 : index
    %5 = vector.load %arg4[%c0_3, %c0_4] : memref<1x128xf32, #tpu.memory_space<vmem>>, vector<1x128xf32>
    %6 = vector.broadcast %5 : vector<1x128xf32> to vector<8x128xf32>
    %7 = arith.mulf %4, %6 : vector<8x128xf32>
    %c0_5 = arith.constant 0 : index
    %c0_6 = arith.constant 0 : index
    %8 = vector.load %arg3[%c0_5, %c0_6] : memref<1x128xf32, #tpu.memory_space<vmem>>, vector<1x128xf32>
    %9 = vector.broadcast %8 : vector<1x128xf32> to vector<8x128xf32>
    %10 = arith.addf %7, %9 : vector<8x128xf32>
    %c0_7 = arith.constant 0 : index
    %c0_8 = arith.constant 0 : index
    %11 = vector.load %arg6[%c0_7, %c0_8] : memref<8x128xf32, #tpu.memory_space<vmem>>, vector<8x128xf32>
    tpu.vector_store %arg6[%c0_7, %c0_8], %10 {strides = array<i32>} : memref<8x128xf32, #tpu.memory_space<vmem>>, vector<8x128xf32>,
    return
  }
  func.func @transform_0(%arg0: i32) -> (i32, i32) {
    %c0_i32 = arith.constant 0 : i32
    %c0_i32_0 = arith.constant 0 : i32
    return %arg0, %c0_i32 : i32, i32
  }
  func.func @transform_1(%arg0: i32) -> (i32, i32) {
    %c0_i32 = arith.constant 0 : i32
    %c0_i32_0 = arith.constant 0 : i32
    %c0_i32_1 = arith.constant 0 : i32
    return %c0_i32, %c0_i32_0 : i32, i32
  }
  func.func @transform_2(%arg0: i32) -> (i32, i32) {
    %c0_i32 = arith.constant 0 : i32
    %c0_i32_0 = arith.constant 0 : i32
    %c0_i32_1 = arith.constant 0 : i32
    return %c0_i32, %c0_i32_0 : i32, i32
  }
  func.func @transform_3(%arg0: i32) -> (i32, i32) {
    %c0_i32 = arith.constant 0 : i32
    %c0_i32_0 = arith.constant 0 : i32
    %c0_i32_1 = arith.constant 0 : i32
    return %c0_i32, %c0_i32_0 : i32, i32
  }
  func.func @transform_4(%arg0: i32) -> i32 {
    %c0_i32 = arith.constant 0 : i32
    %c0_i32_0 = arith.constant 0 : i32
    return %c0_i32 : i32
  }
  func.func @transform_5(%arg0: i32) -> (i32, i32) {
    %c0_i32 = arith.constant 0 : i32
    %c0_i32_0 = arith.constant 0 : i32
    return %arg0, %c0_i32 : i32, i32
  }
}

</mosaic_0001>

<llo_original>
// kernel: quant_model_forward.2
$region0: #{quant_model_forward.2}
  #allocation0 [shape = 'u32[]', space=smem, size = 0x4, offset = 0x4, fixed_abs, tag = 'smem constant byte address 0x4 - core index']
  #allocation1 [shape = 'u32[144,128]{1,0:T(1,128)}', space=vmem, size = 0x12000, scoped, tag = 'internal scratch']
  %s0 = inlined_call_operand.vmem [shape: f32[512,36], index: 0, kind: input, shape index: {}]
  %s1 = inlined_call_operand.vmem [shape: s8[36,8], index: 1, kind: input, shape index: {}]
  %s2 = inlined_call_operand.vmem [shape: f32[1,8], index: 2, kind: input, shape index: {}]
  %s3 = inlined_call_operand.vmem [shape: f32[1,8], index: 3, kind: input, shape index: {}]
  %s4 = inlined_call_operand.vmem [shape: f32[2], index: 4, kind: input, shape index: {}]
  %s5 = inlined_call_operand.vmem [shape: s8[512,8], index: 5, kind: output, shape index: {}]
  %s6 = sld [smem:[#allocation0]]
  $region57: #{quant_model_forward.2} parent=0
    _
  %s8 = ssub.s32 1, %s6
  %s9 = scalar_select 0, %s8, %s6
  $region1: #{quant_model_forward.2} parent=0
    #allocation2 [shape = 'u8[512]{0}', space=smem, size = 0x200, scoped, tag = 'input window, operand 4, single buffered']
    #allocation3 [shape = 's32[2]{0}', space=sflag, size = 0x8, scoped, tag = 'scoped memory for quant_model_forward.2']
    %10 = vsyncpa [#allocation3], 0
    loop: start=0, step=1, limit=4
    $region2: #{quant_model_forward.2} parent=1 // loop_pre_header
      _
    $region3: #{quant_model_forward.2} parent=1 // loop_header
      %s12 = sphi 0, %s16
      %p13 = scmp.ge.s32.totalorder %s12, 4
      %s22 = sphi 0, %s24
      %s25 = sphi 0, %s22
      %s26 = sphi 0, %s25
      %s42 = sphi 0, %s26
      %s46 = sphi 0, %s46
      %s48 = sphi 0, %s46
      %s49 = sphi 0, %s48
      %s63 = sphi 0, %s49
      %s67 = sphi 0, %s67
      %s69 = sphi 0, %s67
      %s70 = sphi 0, %s69
      %s84 = sphi 0, %s70
      %s88 = sphi 0, %s88
      %s90 = sphi 0, %s88
      %s91 = sphi 0, %s90
      %s105 = sphi 0, %s91
      %s109 = sphi 0, %s109
      %s111 = sphi 0, %s109
      %s112 = sphi 0, %s111
      %s126 = sphi 0, %s112
      %s132 = sphi 0, %s134
      %s135 = sphi 0, %s132
      %s136 = sphi 0, %s135
      %s152 = sphi 0, %s136
    $region4: #{quant_model_forward.2} parent=1 // loop_header_branch
      %15 = sbr.rel (%p13) target = $region8
    $region5: #{quant_model_forward.2} parent=1 // loop_body
      %s17 = ssub.s32 %s12, 1
      %s18 = ssub.s32 %s12, 2
      %s19 = sadd.s32 %s12, 1
      %s20 = ssub.s32 %s12, %s19
      %p21 = scmp.eq.s32.totalorder %s20, 0
      %s23 = sadd.s32 %s22, 1
      %s24 = scalar_select %p21, %s22, %s23
      %p27 = pneg %p21
      %p28 = scmp.eq.s32.totalorder %s12, 1
      %p29 = por %p27, %p28
      %p30 = scmp.ne.s32.totalorder %s22, %s25
      %p31 = scmp.eq.s32.totalorder %s12, 0
      %p32 = por %p30, %p31
      %p33 = scmp.ne.s32.totalorder %s22, %s25
      %p34 = scmp.eq.s32.totalorder %s17, 1
      %p35 = por %p33, %p34
      %p36 = scmp.ne.s32.totalorder %s25, %s26
      %p37 = scmp.eq.s32.totalorder %s17, 0
      %p38 = por %p36, %p37
      %p39 = scmp.ne.s32.totalorder %s25, %s26
      %p40 = scmp.eq.s32.totalorder %s18, 1
      %p41 = por %p39, %p40
      %p43 = scmp.ne.s32.totalorder %s26, %s42
      %p44 = scmp.eq.s32.totalorder %s18, 0
      %p45 = por %p43, %p44
      %s47 = sadd.s32 %s46, 1
      %p50 = scmp.eq.s32.totalorder %s12, 1
      %p51 = scmp.ne.s32.totalorder %s46, %s48
      %p52 = scmp.eq.s32.totalorder %s12, 0
      %p53 = por %p51, %p52
      %p54 = scmp.ne.s32.totalorder %s46, %s48
      %p55 = scmp.eq.s32.totalorder %s17, 1
      %p56 = por %p54, %p55
      %p57 = scmp.ne.s32.totalorder %s48, %s49
      %p58 = scmp.eq.s32.totalorder %s17, 0
      %p59 = por %p57, %p58
      %p60 = scmp.ne.s32.totalorder %s48, %s49
      %p61 = scmp.eq.s32.totalorder %s18, 1
      %p62 = por %p60, %p61
      %p64 = scmp.ne.s32.totalorder %s49, %s63
      %p65 = scmp.eq.s32.totalorder %s18, 0
      %p66 = por %p64, %p65
      %s68 = sadd.s32 %s67, 1
      %p71 = scmp.eq.s32.totalorder %s12, 1
      %p72 = scmp.ne.s32.totalorder %s67, %s69
      %p73 = scmp.eq.s32.totalorder %s12, 0
      %p74 = por %p72, %p73
      %p75 = scmp.ne.s32.totalorder %s67, %s69
      %p76 = scmp.eq.s32.totalorder %s17, 1
      %p77 = por %p75, %p76
      %p78 = scmp.ne.s32.totalorder %s69, %s70
      %p79 = scmp.eq.s32.totalorder %s17, 0
      %p80 = por %p78, %p79
      %p81 = scmp.ne.s32.totalorder %s69, %s70
      %p82 = scmp.eq.s32.totalorder %s18, 1
      %p83 = por %p81, %p82
      %p85 = scmp.ne.s32.totalorder %s70, %s84
      %p86 = scmp.eq.s32.totalorder %s18, 0
      %p87 = por %p85, %p86
      %s89 = sadd.s32 %s88, 1
      %p92 = scmp.eq.s32.totalorder %s12, 1
      %p93 = scmp.ne.s32.totalorder %s88, %s90
      %p94 = scmp.eq.s32.totalorder %s12, 0
      %p95 = por %p93, %p94
      %p96 = scmp.ne.s32.totalorder %s88, %s90
      %p97 = scmp.eq.s32.totalorder %s17, 1
      %p98 = por %p96, %p97
      %p99 = scmp.ne.s32.totalorder %s90, %s91
      %p100 = scmp.eq.s32.totalorder %s17, 0
      %p101 = por %p99, %p100
      %p102 = scmp.ne.s32.totalorder %s90, %s91
      %p103 = scmp.eq.s32.totalorder %s18, 1
      %p104 = por %p102, %p103
      %p106 = scmp.ne.s32.totalorder %s91, %s105
      %p107 = scmp.eq.s32.totalorder %s18, 0
      %p108 = por %p106, %p107
      %s110 = sadd.s32 %s109, 1
      %p113 = scmp.eq.s32.totalorder %s12, 1
      %p114 = scmp.ne.s32.totalorder %s109, %s111
      %p115 = scmp.eq.s32.totalorder %s12, 0
      %p116 = por %p114, %p115
      %p117 = scmp.ne.s32.totalorder %s109, %s111
      %p118 = scmp.eq.s32.totalorder %s17, 1
      %p119 = por %p117, %p118
      %p120 = scmp.ne.s32.totalorder %s111, %s112
      %p121 = scmp.eq.s32.totalorder %s17, 0
      %p122 = por %p120, %p121
      %p123 = scmp.ne.s32.totalorder %s111, %s112
      %p124 = scmp.eq.s32.totalorder %s18, 1
      %p125 = por %p123, %p124
      %p127 = scmp.ne.s32.totalorder %s112, %s126
      %p128 = scmp.eq.s32.totalorder %s18, 0
      %p129 = por %p127, %p128
      %s130 = ssub.s32 %s12, %s19
      %p131 = scmp.eq.s32.totalorder %s130, 0
      %s133 = sadd.s32 %s132, 1
      %s134 = scalar_select %p131, %s132, %s133
      %p137 = pneg %p131
      %p138 = scmp.eq.s32.totalorder %s12, 1
      %p139 = por %p137, %p138
      %p140 = scmp.ne.s32.totalorder %s132, %s135
      %p141 = scmp.eq.s32.totalorder %s12, 0
      %p142 = por %p140, %p141
      %p143 = scmp.ne.s32.totalorder %s132, %s135
      %p144 = scmp.eq.s32.totalorder %s17, 1
      %p145 = por %p143, %p144
      %p146 = scmp.ne.s32.totalorder %s135, %s136
      %p147 = scmp.eq.s32.totalorder %s17, 0
      %p148 = por %p146, %p147
      %p149 = scmp.ne.s32.totalorder %s135, %s136
      %p150 = scmp.eq.s32.totalorder %s18, 1
      %p151 = por %p149, %p150
      %p153 = scmp.ne.s32.totalorder %s136, %s152
      %p154 = scmp.eq.s32.totalorder %s18, 0
      %p155 = por %p153, %p154
      %p156 = scmp.le.s32.totalorder 1, %s12
      %p157 = scmp.lt.s32.totalorder %s12, 3
      %p158 = pnand %p156, %p157
      %p159 = pneg %p158
      // Predicated region
      $region9: #{quant_model_forward.2} parent=5 // pred_check
        _
      $region10: #{quant_model_forward.2} parent=5 // pred_check_branch
        %161 = sbr.rel (%p158) target = $region12
      $region11: #{quant_model_forward.2} parent=5 // pred_region
        %s162 = ssub.s32 %s12, 1
        // Predicated region
        $region13: #{quant_model_forward.2} parent=11 // pred_check
          %p163 = pneg %p59
        $region14: #{quant_model_forward.2} parent=11 // pred_check_branch
          %165 = sbr.rel (%p163) target = $region16
        $region15: #{quant_model_forward.2} parent=11 // pred_region
          _
        $region16: #{quant_model_forward.2} parent=11 // pred_fallthru
          _
        // Predicated region
        $region17: #{quant_model_forward.2} parent=11 // pred_check
          %p166 = pneg %p80
        $region18: #{quant_model_forward.2} parent=11 // pred_check_branch
          %168 = sbr.rel (%p166) target = $region20
        $region19: #{quant_model_forward.2} parent=11 // pred_region
          _
        $region20: #{quant_model_forward.2} parent=11 // pred_fallthru
          _
        // Predicated region
        $region21: #{quant_model_forward.2} parent=11 // pred_check
          %p169 = pneg %p101
        $region22: #{quant_model_forward.2} parent=11 // pred_check_branch
          %171 = sbr.rel (%p169) target = $region24
        $region23: #{quant_model_forward.2} parent=11 // pred_region
          _
        $region24: #{quant_model_forward.2} parent=11 // pred_fallthru
          _
        // Predicated region
        $region25: #{quant_model_forward.2} parent=11 // pred_check
          %p172 = pneg %p122
        $region26: #{quant_model_forward.2} parent=11 // pred_check_branch
          %174 = sbr.rel (%p172) target = $region28
        $region27: #{quant_model_forward.2} parent=11 // pred_region
          %s176 = ssub.s32 16, 16
          %177 = vsyncadd [#allocation3], %s176
          %s179 = sshll.u32 %s4, 4
          %s180 = int_to_ptr.vmem [resolvable:$true] %s179
          %182 = dma.vmem_to_smem %s180, 16, [#allocation2], [#allocation3]
        $region28: #{quant_model_forward.2} parent=11 // pred_fallthru
          _
      $region12: #{quant_model_forward.2} parent=5 // pred_fallthru
        _
      %p183 = scmp.lt.s32.totalorder %s12, 2
      // Predicated region
      $region29: #{quant_model_forward.2} parent=5 // pred_check
        %p184 = pneg %p183
      $region30: #{quant_model_forward.2} parent=5 // pred_check_branch
        %186 = sbr.rel (%p184) target = $region32
      $region31: #{quant_model_forward.2} parent=5 // pred_region
        // Predicated region
        $region33: #{quant_model_forward.2} parent=31 // pred_check
          %p187 = pneg %p32
        $region34: #{quant_model_forward.2} parent=31 // pred_check_branch
          %189 = sbr.rel (%p187) target = $region36
        $region35: #{quant_model_forward.2} parent=31 // pred_region
          %s190 = smul.u32 32, %s12
          %p191 = scmp.lt.s32.totalorder %s190, 63
          %s192 = scalar_select %p191, %s190, 63
          %s193 = smul.addr %s192, 8
          %s194 = scalar_lea.vmem %s0, %s193
          %s195 = smul.u32 32, %s12
        $region36: #{quant_model_forward.2} parent=31 // pred_fallthru
          _
      $region32: #{quant_model_forward.2} parent=5 // pred_fallthru
        _
      %p196 = scmp.le.s32.totalorder 1, %s12
      %p197 = scmp.lt.s32.totalorder %s12, 3
      %p198 = pnand %p196, %p197
      %p199 = pneg %p198
      // Predicated region
      $region37: #{quant_model_forward.2} parent=5 // pred_check
        _
      $region38: #{quant_model_forward.2} parent=5 // pred_check_branch
        %201 = sbr.rel (%p198) target = $region40
      $region39: #{quant_model_forward.2} parent=5 // pred_region
        %s202 = ssub.s32 %s12, 1
        // Predicated region
        $region41: #{quant_model_forward.2} parent=39 // pred_check
          %p203 = pneg %p122
        $region42: #{quant_model_forward.2} parent=39 // pred_check_branch
          %205 = sbr.rel (%p203) target = $region44
        $region43: #{quant_model_forward.2} parent=39 // pred_region
          %206 = dma.done [#allocation3], 16
        $region44: #{quant_model_forward.2} parent=39 // pred_fallthru
          _
        %207 = sfence
        %s208 = smul.u32 32, %s17
        %p209 = scmp.lt.s32.totalorder %s208, 63
        %s210 = scalar_select %p209, %s208, 63
        %s211 = smul.addr %s210, 8
        %s212 = scalar_lea.vmem %s0, %s211
        %p213 = pneg %p38
        %p214 = pneg %p35
        %p215 = pneg %p59
        %p216 = pneg %p56
        %p217 = pneg %p80
        %p218 = pneg %p77
        %p219 = pneg %p101
        %p220 = pneg %p98
        %p221 = pneg %p122
        %p222 = pneg %p119
        %p223 = pneg %p148
        %p224 = pneg %p145
        %s225 = smul.u32 32, %s17
        %p226 = scmp.lt.s32.totalorder %s225, 63
        %s227 = scalar_select %p226, %s225, 63
        %s228 = smul.addr %s227, 2
        %s229 = scalar_lea.vmem %s5, %s228
        %s230 = smul.u32 32, %s17
        %p231 = scmp.lt.s32.totalorder %s230, 63
        %s232 = scalar_select %p231, %s230, 63
        %s233 = smul.addr %s232, 8
        %s234 = scalar_lea.vmem %s0, %s233
        %s235 = smul.u32 32, %s17
        %s236 = smul.u32 32, %s17
        %p237 = scmp.lt.s32.totalorder %s236, 63
        %s238 = scalar_select %p237, %s236, 63
        %s239 = smul.addr %s238, 2
        %s240 = scalar_lea.vmem %s5, %s239
        %s241 = smul.u32 32, %s17
        %s243 = sld [smem:[#allocation2]]
        %v244 = vld [vmem:[%s234] sm:$0xff]
        %v245 = vld [vmem:[%s234 + $0x8] sm:$0xff]
        %v246 = vld [vmem:[%s234 + $0x10] sm:$0xff]
        %v247 = vld [vmem:[%s234 + $0x18] sm:$0xff]
        %v248 = vld [vmem:[%s234 + $0x20] sm:$0xff]
        %v249 = vld [vmem:[%s234 + $0x28] sm:$0xff]
        %v250 = vld [vmem:[%s234 + $0x30] sm:$0xff]
        %v251 = vld [vmem:[%s234 + $0x38] sm:$0xff]
        %v252 = vld [vmem:[%s234 + $0x40] sm:$0xff]
        %v253 = vld [vmem:[%s234 + $0x48] sm:$0xff]
        %v254 = vld [vmem:[%s234 + $0x50] sm:$0xff]
        %v255 = vld [vmem:[%s234 + $0x58] sm:$0xff]
        %v256 = vld [vmem:[%s234 + $0x60] sm:$0xff]
        %v257 = vld [vmem:[%s234 + $0x68] sm:$0xff]
        %v258 = vld [vmem:[%s234 + $0x70] sm:$0xff]
        %v259 = vld [vmem:[%s234 + $0x78] sm:$0xff]
        %v260 = vld [vmem:[%s234 + $0x80] sm:$0xff]
        %v261 = vld [vmem:[%s234 + $0x88] sm:$0xff]
        %v262 = vld [vmem:[%s234 + $0x90] sm:$0xff]
        %v263 = vld [vmem:[%s234 + $0x98] sm:$0xff]
        %v264 = vld [vmem:[%s234 + $0xa0] sm:$0xff]
        %v265 = vld [vmem:[%s234 + $0xa8] sm:$0xff]
        %v266 = vld [vmem:[%s234 + $0xb0] sm:$0xff]
        %v267 = vld [vmem:[%s234 + $0xb8] sm:$0xff]
        %v268 = vld [vmem:[%s234 + $0xc0] sm:$0xff]
        %v269 = vld [vmem:[%s234 + $0xc8] sm:$0xff]
        %v270 = vld [vmem:[%s234 + $0xd0] sm:$0xff]
        %v271 = vld [vmem:[%s234 + $0xd8] sm:$0xff]
        %v272 = vld [vmem:[%s234 + $0xe0] sm:$0xff]
        %v273 = vld [vmem:[%s234 + $0xe8] sm:$0xff]
        %v274 = vld [vmem:[%s234 + $0xf0] sm:$0xff]
        %v275 = vld [vmem:[%s234 + $0xf8] sm:$0xff]
        %v276 = vstv %s243
        %v277 = vmul.f32 %v244, %v276
        %v278 = vmul.f32 %v245, %v276
        %v279 = vmul.f32 %v246, %v276
        %v280 = vmul.f32 %v247, %v276
        %v281 = vmul.f32 %v248, %v276
        %v282 = vmul.f32 %v249, %v276
        %v283 = vmul.f32 %v250, %v276
        %v284 = vmul.f32 %v251, %v276
        %v285 = vmul.f32 %v252, %v276
        %v286 = vmul.f32 %v253, %v276
        %v287 = vmul.f32 %v254, %v276
        %v288 = vmul.f32 %v255, %v276
        %v289 = vmul.f32 %v256, %v276
        %v290 = vmul.f32 %v257, %v276
        %v291 = vmul.f32 %v258, %v276
        %v292 = vmul.f32 %v259, %v276
        %v293 = vmul.f32 %v260, %v276
        %v294 = vmul.f32 %v261, %v276
        %v295 = vmul.f32 %v262, %v276
        %v296 = vmul.f32 %v263, %v276
        %v297 = vmul.f32 %v264, %v276
        %v298 = vmul.f32 %v265, %v276
        %v299 = vmul.f32 %v266, %v276
        %v300 = vmul.f32 %v267, %v276
        %v301 = vmul.f32 %v268, %v276
        %v302 = vmul.f32 %v269, %v276
        %v303 = vmul.f32 %v270, %v276
        %v304 = vmul.f32 %v271, %v276
        %v305 = vmul.f32 %v272, %v276
        %v306 = vmul.f32 %v273, %v276
        %v307 = vmul.f32 %v274, %v276
        %v308 = vmul.f32 %v275, %v276
        %v309 = vround.ne.pseudo %v277
        %v310 = vround.ne.pseudo %v278
        %v311 = vround.ne.pseudo %v279
        %v312 = vround.ne.pseudo %v280
        %v313 = vround.ne.pseudo %v281
        %v314 = vround.ne.pseudo %v282
        %v315 = vround.ne.pseudo %v283
        %v316 = vround.ne.pseudo %v284
        %v317 = vround.ne.pseudo %v285
        %v318 = vround.ne.pseudo %v286
        %v319 = vround.ne.pseudo %v287
        %v320 = vround.ne.pseudo %v288
        %v321 = vround.ne.pseudo %v289
        %v322 = vround.ne.pseudo %v290
        %v323 = vround.ne.pseudo %v291
        %v324 = vround.ne.pseudo %v292
        %v325 = vround.ne.pseudo %v293
        %v326 = vround.ne.pseudo %v294
        %v327 = vround.ne.pseudo %v295
        %v328 = vround.ne.pseudo %v296
        %v329 = vround.ne.pseudo %v297
        %v330 = vround.ne.pseudo %v298
        %v331 = vround.ne.pseudo %v299
        %v332 = vround.ne.pseudo %v300
        %v333 = vround.ne.pseudo %v301
        %v334 = vround.ne.pseudo %v302
        %v335 = vround.ne.pseudo %v303
        %v336 = vround.ne.pseudo %v304
        %v337 = vround.ne.pseudo %v305
        %v338 = vround.ne.pseudo %v306
        %v339 = vround.ne.pseudo %v307
        %v340 = vround.ne.pseudo %v308
        %v341 = vmax.f32 %v309, -128.0
        %v342 = vmax.f32 %v310, -128.0
        %v343 = vmax.f32 %v311, -128.0
        %v344 = vmax.f32 %v312, -128.0
        %v345 = vmax.f32 %v313, -128.0
        %v346 = vmax.f32 %v314, -128.0
        %v347 = vmax.f32 %v315, -128.0
        %v348 = vmax.f32 %v316, -128.0
        %v349 = vmax.f32 %v317, -128.0
        %v350 = vmax.f32 %v318, -128.0
        %v351 = vmax.f32 %v319, -128.0
        %v352 = vmax.f32 %v320, -128.0
        %v353 = vmax.f32 %v321, -128.0
        %v354 = vmax.f32 %v322, -128.0
        %v355 = vmax.f32 %v323, -128.0
        %v356 = vmax.f32 %v324, -128.0
        %v357 = vmax.f32 %v325, -128.0
        %v358 = vmax.f32 %v326, -128.0
        %v359 = vmax.f32 %v327, -128.0
        %v360 = vmax.f32 %v328, -128.0
        %v361 = vmax.f32 %v329, -128.0
        %v362 = vmax.f32 %v330, -128.0
        %v363 = vmax.f32 %v331, -128.0
        %v364 = vmax.f32 %v332, -128.0
        %v365 = vmax.f32 %v333, -128.0
        %v366 = vmax.f32 %v334, -128.0
        %v367 = vmax.f32 %v335, -128.0
        %v368 = vmax.f32 %v336, -128.0
        %v369 = vmax.f32 %v337, -128.0
        %v370 = vmax.f32 %v338, -128.0
        %v371 = vmax.f32 %v339, -128.0
        %v372 = vmax.f32 %v340, -128.0
        %v373 = vmin.f32 %v341, 127.0
        %v374 = vmin.f32 %v342, 127.0
        %v375 = vmin.f32 %v343, 127.0
        %v376 = vmin.f32 %v344, 127.0
        %v377 = vmin.f32 %v345, 127.0
        %v378 = vmin.f32 %v346, 127.0
        %v379 = vmin.f32 %v347, 127.0
        %v380 = vmin.f32 %v348, 127.0
        %v381 = vmin.f32 %v349, 127.0
        %v382 = vmin.f32 %v350, 127.0
        %v383 = vmin.f32 %v351, 127.0
        %v384 = vmin.f32 %v352, 127.0
        %v385 = vmin.f32 %v353, 127.0
        %v386 = vmin.f32 %v354, 127.0
        %v387 = vmin.f32 %v355, 127.0
        %v388 = vmin.f32 %v356, 127.0
        %v389 = vmin.f32 %v357, 127.0
        %v390 = vmin.f32 %v358, 127.0
        %v391 = vmin.f32 %v359, 127.0
        %v392 = vmin.f32 %v360, 127.0
        %v393 = vmin.f32 %v361, 127.0
        %v394 = vmin.f32 %v362, 127.0
        %v395 = vmin.f32 %v363, 127.0
        %v396 = vmin.f32 %v364, 127.0
        %v397 = vmin.f32 %v365, 127.0
        %v398 = vmin.f32 %v366, 127.0
        %v399 = vmin.f32 %v367, 127.0
        %v400 = vmin.f32 %v368, 127.0
        %v401 = vmin.f32 %v369, 127.0
        %v402 = vmin.f32 %v370, 127.0
        %v403 = vmin.f32 %v371, 127.0
        %v404 = vmin.f32 %v372, 127.0
        %v405 = vpack.c.bf16 %v374, %v373
        %v406 = vpack.c.bf16 %v376, %v375
        %v407 = vpack.c.bf16 %v378, %v377
        %v408 = vpack.c.bf16 %v380, %v379
        %v409 = vpack.c.bf16 %v382, %v381
        %v410 = vpack.c.bf16 %v384, %v383
        %v411 = vpack.c.bf16 %v386, %v385
        %v412 = vpack.c.bf16 %v388, %v387
        %v413 = vpack.c.bf16 %v390, %v389
        %v414 = vpack.c.bf16 %v392, %v391
        %v415 = vpack.c.bf16 %v394, %v393
        %v416 = vpack.c.bf16 %v396, %v395
        %v417 = vpack.c.bf16 %v398, %v397
        %v418 = vpack.c.bf16 %v400, %v399
        %v419 = vpack.c.bf16 %v402, %v401
        %v420 = vpack.c.bf16 %v404, %v403
        %v421 = vld [vmem:[%s1] sm:$0x3]
        %v422 = vld [vmem:[%s1 + $0x2] sm:$0x3]
        %v423 = vld [vmem:[%s1 + $0x4] sm:$0x3]
        %v424 = vld [vmem:[%s1 + $0x6] sm:$0x3]
        %v425 = vld [vmem:[%s1 + $0x8] sm:$0x1]
        %v426 = vunpack.c.l.s8.bf16 %v421
        %v427 = vunpack.c.l.s8.bf16 %v422
        %v428 = vunpack.c.l.s8.bf16 %v423
        %v429 = vunpack.c.l.s8.bf16 %v424
        %v430 = vunpack.c.l.s8.bf16 %v425
        %v436 = vunpack.c.l.b16 %v426
        %v437 = vunpack.c.l.b16 %v427
        %v438 = vunpack.c.l.b16 %v428
        %v439 = vunpack.c.l.b16 %v429
        %v440 = vunpack.c.l.b16 %v430
        %v441 = vpack.c.b16 %v437, %v436
        %v442 = vpack.c.b16 %v439, %v438
        %v443 = vpack.c.b16 %v440, %v440
        %vm446 = vcmask 293888
        %v448 = vsel %vm446, %v405, 0
        %v451 = vsel %vm446, %v406, 0
        %v454 = vsel %vm446, %v407, 0
        %v457 = vsel %vm446, %v408, 0
        %v460 = vsel %vm446, %v409, 0
        %v463 = vsel %vm446, %v410, 0
        %v466 = vsel %vm446, %v411, 0
        %v469 = vsel %vm446, %v412, 0
        %v472 = vsel %vm446, %v413, 0
        %v475 = vsel %vm446, %v414, 0
        %v478 = vsel %vm446, %v415, 0
        %v481 = vsel %vm446, %v416, 0
        %v484 = vsel %vm446, %v417, 0
        %v487 = vsel %vm446, %v418, 0
        %v490 = vsel %vm446, %v419, 0
        %v493 = vsel %vm446, %v420, 0
        %vm495 = vcmask 1041408
        %v497 = vsel %vm495, %v443, 0
        %499 = vmatprep.subr.bf16.mxu0 0
        %500 = vmatpush1.bf16.msra.mxu0 0
        %501 = vmatprep.subr.bf16.mxu0 0
        %502 = vmatpush1.bf16.msra.mxu0 0
        %503 = vmatprep.subr.bf16.mxu0 0
        %504 = vmatpush1.bf16.msra.mxu0 0
        %505 = vmatprep.subr.bf16.mxu0 0
        %506 = vmatpush1.bf16.msra.mxu0 0
        %507 = vmatprep.subr.bf16.mxu0 0
        %508 = vmatpush1.bf16.msra.mxu0 0
        %509 = vmatprep.subr.bf16.mxu0 0
        %510 = vmatpush1.bf16.msra.mxu0 %v497
        %511 = vmatprep.subr.bf16.mxu0 0
        %512 = vmatpush1.bf16.msra.mxu0 %v442
        %513 = vmatprep.subr.bf16.mxu0 0
        %514 = vmatpush1.bf16.msra.mxu0 %v441
        %515 = vmatprep.subr.bf16.mxu0 0
        %516 = vmatpush2.bf16.msra.mxu0 0
        %517 = vmatprep.subr.bf16.mxu0 0
        %518 = vmatpush2.bf16.msra.mxu0 0
        %519 = vmatprep.subr.bf16.mxu0 0
        %520 = vmatpush2.bf16.msra.mxu0 0
        %521 = vmatprep.subr.bf16.mxu0 0
        %522 = vmatpush2.bf16.msra.mxu0 0
        %523 = vmatprep.subr.bf16.mxu0 0
        %524 = vmatpush2.bf16.msra.mxu0 0
        %525 = vmatprep.subr.bf16.mxu0 0
        %526 = vmatpush2.bf16.msra.mxu0 0
        %527 = vmatprep.subr.bf16.mxu0 0
        %528 = vmatpush2.bf16.msra.mxu0 0
        %529 = vmatprep.subr.bf16.mxu0 0
        %530 = vmatpush2.bf16.msra.mxu0 0
        %531 = vmatprep.mubr.bf16.mxu0 0
        %532 = vmatmul.mubr.bf16.gmra.mxu0 %v448
        %v533 = vpop.f32.mrf.mxu0
        %v534 = vadd.f32 0.0, %v533
        %v535 = vpop.f32.mrf.mxu0
        %v536 = vpop.f32.mrf.mxu0
        %v537 = vadd.f32 0.0, %v536
        %v538 = vpop.f32.mrf.mxu0
        %539 = vmatprep.mubr.bf16.mxu0 0
        %540 = vmatmul.mubr.bf16.gmra.mxu0 %v451
        %v541 = vpop.f32.mrf.mxu0
        %v542 = vadd.f32 0.0, %v541
        %v543 = vpop.f32.mrf.mxu0
        %v544 = vpop.f32.mrf.mxu0
        %v545 = vadd.f32 0.0, %v544
        %v546 = vpop.f32.mrf.mxu0
        %547 = vmatprep.mubr.bf16.mxu0 0
        %548 = vmatmul.mubr.bf16.gmra.mxu0 %v454
        %v549 = vpop.f32.mrf.mxu0
        %v550 = vadd.f32 0.0, %v549
        %v551 = vpop.f32.mrf.mxu0
        %v552 = vpop.f32.mrf.mxu0
        %v553 = vadd.f32 0.0, %v552
        %v554 = vpop.f32.mrf.mxu0
        %555 = vmatprep.mubr.bf16.mxu0 0
        %556 = vmatmul.mubr.bf16.gmra.mxu0 %v457
        %v557 = vpop.f32.mrf.mxu0
        %v558 = vadd.f32 0.0, %v557
        %v559 = vpop.f32.mrf.mxu0
        %v560 = vpop.f32.mrf.mxu0
        %v561 = vadd.f32 0.0, %v560
        %v562 = vpop.f32.mrf.mxu0
        %563 = vmatprep.mubr.bf16.mxu0 0
        %564 = vmatmul.mubr.bf16.gmra.mxu0 %v460
        %v565 = vpop.f32.mrf.mxu0
        %v566 = vadd.f32 0.0, %v565
        %v567 = vpop.f32.mrf.mxu0
        %v568 = vpop.f32.mrf.mxu0
        %v569 = vadd.f32 0.0, %v568
        %v570 = vpop.f32.mrf.mxu0
        %571 = vmatprep.mubr.bf16.mxu0 0
        %572 = vmatmul.mubr.bf16.gmra.mxu0 %v463
        %v573 = vpop.f32.mrf.mxu0
        %v574 = vadd.f32 0.0, %v573
        %v575 = vpop.f32.mrf.mxu0
        %v576 = vpop.f32.mrf.mxu0
        %v577 = vadd.f32 0.0, %v576
        %v578 = vpop.f32.mrf.mxu0
        %579 = vmatprep.mubr.bf16.mxu0 0
        %580 = vmatmul.mubr.bf16.gmra.mxu0 %v466
        %v581 = vpop.f32.mrf.mxu0
        %v582 = vadd.f32 0.0, %v581
        %v583 = vpop.f32.mrf.mxu0
        %v584 = vpop.f32.mrf.mxu0
        %v585 = vadd.f32 0.0, %v584
        %v586 = vpop.f32.mrf.mxu0
        %587 = vmatprep.mubr.bf16.mxu0 0
        %588 = vmatmul.mubr.bf16.gmra.mxu0 %v469
        %v589 = vpop.f32.mrf.mxu0
        %v590 = vadd.f32 0.0, %v589
        %v591 = vpop.f32.mrf.mxu0
        %v592 = vpop.f32.mrf.mxu0
        %v593 = vadd.f32 0.0, %v592
        %v594 = vpop.f32.mrf.mxu0
        %595 = vmatprep.mubr.bf16.mxu0 0
        %596 = vmatmul.mubr.bf16.gmra.mxu0 %v472
        %v597 = vpop.f32.mrf.mxu0
        %v598 = vadd.f32 0.0, %v597
        %v599 = vpop.f32.mrf.mxu0
        %v600 = vpop.f32.mrf.mxu0
        %v601 = vadd.f32 0.0, %v600
        %v602 = vpop.f32.mrf.mxu0
        %603 = vmatprep.mubr.bf16.mxu0 0
        %604 = vmatmul.mubr.bf16.gmra.mxu0 %v475
        %v605 = vpop.f32.mrf.mxu0
        %v606 = vadd.f32 0.0, %v605
        %v607 = vpop.f32.mrf.mxu0
        %v608 = vpop.f32.mrf.mxu0
        %v609 = vadd.f32 0.0, %v608
        %v610 = vpop.f32.mrf.mxu0
        %611 = vmatprep.mubr.bf16.mxu0 0
        %612 = vmatmul.mubr.bf16.gmra.mxu0 %v478
        %v613 = vpop.f32.mrf.mxu0
        %v614 = vadd.f32 0.0, %v613
        %v615 = vpop.f32.mrf.mxu0
        %v616 = vpop.f32.mrf.mxu0
        %v617 = vadd.f32 0.0, %v616
        %v618 = vpop.f32.mrf.mxu0
        %619 = vmatprep.mubr.bf16.mxu0 0
        %620 = vmatmul.mubr.bf16.gmra.mxu0 %v481
        %v621 = vpop.f32.mrf.mxu0
        %v622 = vadd.f32 0.0, %v621
        %v623 = vpop.f32.mrf.mxu0
        %v624 = vpop.f32.mrf.mxu0
        %v625 = vadd.f32 0.0, %v624
        %v626 = vpop.f32.mrf.mxu0
        %627 = vmatprep.mubr.bf16.mxu0 0
        %628 = vmatmul.mubr.bf16.gmra.mxu0 %v484
        %v629 = vpop.f32.mrf.mxu0
        %v630 = vadd.f32 0.0, %v629
        %v631 = vpop.f32.mrf.mxu0
        %v632 = vpop.f32.mrf.mxu0
        %v633 = vadd.f32 0.0, %v632
        %v634 = vpop.f32.mrf.mxu0
        %635 = vmatprep.mubr.bf16.mxu0 0
        %636 = vmatmul.mubr.bf16.gmra.mxu0 %v487
        %v637 = vpop.f32.mrf.mxu0
        %v638 = vadd.f32 0.0, %v637
        %v639 = vpop.f32.mrf.mxu0
        %v640 = vpop.f32.mrf.mxu0
        %v641 = vadd.f32 0.0, %v640
        %v642 = vpop.f32.mrf.mxu0
        %643 = vmatprep.mubr.bf16.mxu0 0
        %644 = vmatmul.mubr.bf16.gmra.mxu0 %v490
        %v645 = vpop.f32.mrf.mxu0
        %v646 = vadd.f32 0.0, %v645
        %v647 = vpop.f32.mrf.mxu0
        %v648 = vpop.f32.mrf.mxu0
        %v649 = vadd.f32 0.0, %v648
        %v650 = vpop.f32.mrf.mxu0
        %651 = vmatprep.mubr.bf16.mxu0 0
        %652 = vmatmul.mubr.bf16.gmra.mxu0 %v493
        %v653 = vpop.f32.mrf.mxu0
        %v654 = vadd.f32 0.0, %v653
        %v655 = vpop.f32.mrf.mxu0
        %v656 = vpop.f32.mrf.mxu0
        %v657 = vadd.f32 0.0, %v656
        %v658 = vpop.f32.mrf.mxu0
        %659 = vdwg.mxu0
        %v660 = vld [vmem:[%s3] sm:$0x1]
        %v662 = vlaneseq
        %v663 = vshrl.u32 %v662, 7
        %v664 = vsub.s32 0, %v663
        %v665 = vrot.slane %v660, %v664
        %v667 = vmul.f32 %v534, %v665
        %v668 = vmul.f32 %v537, %v665
        %v669 = vmul.f32 %v542, %v665
        %v670 = vmul.f32 %v545, %v665
        %v671 = vmul.f32 %v550, %v665
        %v672 = vmul.f32 %v553, %v665
        %v673 = vmul.f32 %v558, %v665
        %v674 = vmul.f32 %v561, %v665
        %v675 = vmul.f32 %v566, %v665
        %v676 = vmul.f32 %v569, %v665
        %v677 = vmul.f32 %v574, %v665
        %v678 = vmul.f32 %v577, %v665
        %v679 = vmul.f32 %v582, %v665
        %v680 = vmul.f32 %v585, %v665
        %v681 = vmul.f32 %v590, %v665
        %v682 = vmul.f32 %v593, %v665
        %v683 = vmul.f32 %v598, %v665
        %v684 = vmul.f32 %v601, %v665
        %v685 = vmul.f32 %v606, %v665
        %v686 = vmul.f32 %v609, %v665
        %v687 = vmul.f32 %v614, %v665
        %v688 = vmul.f32 %v617, %v665
        %v689 = vmul.f32 %v622, %v665
        %v690 = vmul.f32 %v625, %v665
        %v691 = vmul.f32 %v630, %v665
        %v692 = vmul.f32 %v633, %v665
        %v693 = vmul.f32 %v638, %v665
        %v694 = vmul.f32 %v641, %v665
        %v695 = vmul.f32 %v646, %v665
        %v696 = vmul.f32 %v649, %v665
        %v697 = vmul.f32 %v654, %v665
        %v698 = vmul.f32 %v657, %v665
        %v699 = vld [vmem:[%s2] sm:$0x1]
        %v701 = vlaneseq
        %v702 = vshrl.u32 %v701, 7
        %v703 = vsub.s32 0, %v702
        %v704 = vrot.slane %v699, %v703
        %v706 = vadd.f32 %v667, %v704
        %v707 = vadd.f32 %v668, %v704
        %v708 = vadd.f32 %v669, %v704
        %v709 = vadd.f32 %v670, %v704
        %v710 = vadd.f32 %v671, %v704
        %v711 = vadd.f32 %v672, %v704
        %v712 = vadd.f32 %v673, %v704
        %v713 = vadd.f32 %v674, %v704
        %v714 = vadd.f32 %v675, %v704
        %v715 = vadd.f32 %v676, %v704
        %v716 = vadd.f32 %v677, %v704
        %v717 = vadd.f32 %v678, %v704
        %v718 = vadd.f32 %v679, %v704
        %v719 = vadd.f32 %v680, %v704
        %v720 = vadd.f32 %v681, %v704
        %v721 = vadd.f32 %v682, %v704
        %v722 = vadd.f32 %v683, %v704
        %v723 = vadd.f32 %v684, %v704
        %v724 = vadd.f32 %v685, %v704
        %v725 = vadd.f32 %v686, %v704
        %v726 = vadd.f32 %v687, %v704
        %v727 = vadd.f32 %v688, %v704
        %v728 = vadd.f32 %v689, %v704
        %v729 = vadd.f32 %v690, %v704
        %v730 = vadd.f32 %v691, %v704
        %v731 = vadd.f32 %v692, %v704
        %v732 = vadd.f32 %v693, %v704
        %v733 = vadd.f32 %v694, %v704
        %v734 = vadd.f32 %v695, %v704
        %v735 = vadd.f32 %v696, %v704
        %v736 = vadd.f32 %v697, %v704
        %v737 = vadd.f32 %v698, %v704
        %v738 = vmax.f32 %v706, 0.0
        %v739 = vmax.f32 %v707, 0.0
        %v740 = vmax.f32 %v708, 0.0
        %v741 = vmax.f32 %v709, 0.0
        %v742 = vmax.f32 %v710, 0.0
        %v743 = vmax.f32 %v711, 0.0
        %v744 = vmax.f32 %v712, 0.0
        %v745 = vmax.f32 %v713, 0.0
        %v746 = vmax.f32 %v714, 0.0
        %v747 = vmax.f32 %v715, 0.0
        %v748 = vmax.f32 %v716, 0.0
        %v749 = vmax.f32 %v717, 0.0
        %v750 = vmax.f32 %v718, 0.0
        %v751 = vmax.f32 %v719, 0.0
        %v752 = vmax.f32 %v720, 0.0
        %v753 = vmax.f32 %v721, 0.0
        %v754 = vmax.f32 %v722, 0.0
        %v755 = vmax.f32 %v723, 0.0
        %v756 = vmax.f32 %v724, 0.0
        %v757 = vmax.f32 %v725, 0.0
        %v758 = vmax.f32 %v726, 0.0
        %v759 = vmax.f32 %v727, 0.0
        %v760 = vmax.f32 %v728, 0.0
        %v761 = vmax.f32 %v729, 0.0
        %v762 = vmax.f32 %v730, 0.0
        %v763 = vmax.f32 %v731, 0.0
        %v764 = vmax.f32 %v732, 0.0
        %v765 = vmax.f32 %v733, 0.0
        %v766 = vmax.f32 %v734, 0.0
        %v767 = vmax.f32 %v735, 0.0
        %v768 = vmax.f32 %v736, 0.0
        %v769 = vmax.f32 %v737, 0.0
        %s770 = sld [smem:[#allocation2 + $0x1]]
        %v771 = vstv %s770
        %v772 = vmul.f32 %v738, %v771
        %v773 = vmul.f32 %v739, %v771
        %v774 = vmul.f32 %v740, %v771
        %v775 = vmul.f32 %v741, %v771
        %v776 = vmul.f32 %v742, %v771
        %v777 = vmul.f32 %v743, %v771
        %v778 = vmul.f32 %v744, %v771
        %v779 = vmul.f32 %v745, %v771
        %v780 = vmul.f32 %v746, %v771
        %v781 = vmul.f32 %v747, %v771
        %v782 = vmul.f32 %v748, %v771
        %v783 = vmul.f32 %v749, %v771
        %v784 = vmul.f32 %v750, %v771
        %v785 = vmul.f32 %v751, %v771
        %v786 = vmul.f32 %v752, %v771
        %v787 = vmul.f32 %v753, %v771
        %v788 = vmul.f32 %v754, %v771
        %v789 = vmul.f32 %v755, %v771
        %v790 = vmul.f32 %v756, %v771
        %v791 = vmul.f32 %v757, %v771
        %v792 = vmul.f32 %v758, %v771
        %v793 = vmul.f32 %v759, %v771
        %v794 = vmul.f32 %v760, %v771
        %v795 = vmul.f32 %v761, %v771
        %v796 = vmul.f32 %v762, %v771
        %v797 = vmul.f32 %v763, %v771
        %v798 = vmul.f32 %v764, %v771
        %v799 = vmul.f32 %v765, %v771
        %v800 = vmul.f32 %v766, %v771
        %v801 = vmul.f32 %v767, %v771
        %v802 = vmul.f32 %v768, %v771
        %v803 = vmul.f32 %v769, %v771
        %v804 = vround.ne.pseudo %v772
        %v805 = vround.ne.pseudo %v773
        %v806 = vround.ne.pseudo %v774
        %v807 = vround.ne.pseudo %v775
        %v808 = vround.ne.pseudo %v776
        %v809 = vround.ne.pseudo %v777
        %v810 = vround.ne.pseudo %v778
        %v811 = vround.ne.pseudo %v779
        %v812 = vround.ne.pseudo %v780
        %v813 = vround.ne.pseudo %v781
        %v814 = vround.ne.pseudo %v782
        %v815 = vround.ne.pseudo %v783
        %v816 = vround.ne.pseudo %v784
        %v817 = vround.ne.pseudo %v785
        %v818 = vround.ne.pseudo %v786
        %v819 = vround.ne.pseudo %v787
        %v820 = vround.ne.pseudo %v788
        %v821 = vround.ne.pseudo %v789
        %v822 = vround.ne.pseudo %v790
        %v823 = vround.ne.pseudo %v791
        %v824 = vround.ne.pseudo %v792
        %v825 = vround.ne.pseudo %v793
        %v826 = vround.ne.pseudo %v794
        %v827 = vround.ne.pseudo %v795
        %v828 = vround.ne.pseudo %v796
        %v829 = vround.ne.pseudo %v797
        %v830 = vround.ne.pseudo %v798
        %v831 = vround.ne.pseudo %v799
        %v832 = vround.ne.pseudo %v800
        %v833 = vround.ne.pseudo %v801
        %v834 = vround.ne.pseudo %v802
        %v835 = vround.ne.pseudo %v803
        %v836 = vmax.f32 %v804, -128.0
        %v837 = vmax.f32 %v805, -128.0
        %v838 = vmax.f32 %v806, -128.0
        %v839 = vmax.f32 %v807, -128.0
        %v840 = vmax.f32 %v808, -128.0
        %v841 = vmax.f32 %v809, -128.0
        %v842 = vmax.f32 %v810, -128.0
        %v843 = vmax.f32 %v811, -128.0
        %v844 = vmax.f32 %v812, -128.0
        %v845 = vmax.f32 %v813, -128.0
        %v846 = vmax.f32 %v814, -128.0
        %v847 = vmax.f32 %v815, -128.0
        %v848 = vmax.f32 %v816, -128.0
        %v849 = vmax.f32 %v817, -128.0
        %v850 = vmax.f32 %v818, -128.0
        %v851 = vmax.f32 %v819, -128.0
        %v852 = vmax.f32 %v820, -128.0
        %v853 = vmax.f32 %v821, -128.0
        %v854 = vmax.f32 %v822, -128.0
        %v855 = vmax.f32 %v823, -128.0
        %v856 = vmax.f32 %v824, -128.0
        %v857 = vmax.f32 %v825, -128.0
        %v858 = vmax.f32 %v826, -128.0
        %v859 = vmax.f32 %v827, -128.0
        %v860 = vmax.f32 %v828, -128.0
        %v861 = vmax.f32 %v829, -128.0
        %v862 = vmax.f32 %v830, -128.0
        %v863 = vmax.f32 %v831, -128.0
        %v864 = vmax.f32 %v832, -128.0
        %v865 = vmax.f32 %v833, -128.0
        %v866 = vmax.f32 %v834, -128.0
        %v867 = vmax.f32 %v835, -128.0
        %v868 = vmin.f32 %v836, 127.0
        %v869 = vmin.f32 %v837, 127.0
        %v870 = vmin.f32 %v838, 127.0
        %v871 = vmin.f32 %v839, 127.0
        %v872 = vmin.f32 %v840, 127.0
        %v873 = vmin.f32 %v841, 127.0
        %v874 = vmin.f32 %v842, 127.0
        %v875 = vmin.f32 %v843, 127.0
        %v876 = vmin.f32 %v844, 127.0
        %v877 = vmin.f32 %v845, 127.0
        %v878 = vmin.f32 %v846, 127.0
        %v879 = vmin.f32 %v847, 127.0
        %v880 = vmin.f32 %v848, 127.0
        %v881 = vmin.f32 %v849, 127.0
        %v882 = vmin.f32 %v850, 127.0
        %v883 = vmin.f32 %v851, 127.0
        %v884 = vmin.f32 %v852, 127.0
        %v885 = vmin.f32 %v853, 127.0
        %v886 = vmin.f32 %v854, 127.0
        %v887 = vmin.f32 %v855, 127.0
        %v888 = vmin.f32 %v856, 127.0
        %v889 = vmin.f32 %v857, 127.0
        %v890 = vmin.f32 %v858, 127.0
        %v891 = vmin.f32 %v859, 127.0
        %v892 = vmin.f32 %v860, 127.0
        %v893 = vmin.f32 %v861, 127.0
        %v894 = vmin.f32 %v862, 127.0
        %v895 = vmin.f32 %v863, 127.0
        %v896 = vmin.f32 %v864, 127.0
        %v897 = vmin.f32 %v865, 127.0
        %v898 = vmin.f32 %v866, 127.0
        %v899 = vmin.f32 %v867, 127.0
        %v900 = vmax.f32 %v868, -128.0
        %v901 = vmax.f32 %v869, -128.0
        %v902 = vmax.f32 %v870, -128.0
        %v903 = vmax.f32 %v871, -128.0
        %v904 = vmax.f32 %v872, -128.0
        %v905 = vmax.f32 %v873, -128.0
        %v906 = vmax.f32 %v874, -128.0
        %v907 = vmax.f32 %v875, -128.0
        %v908 = vmax.f32 %v876, -128.0
        %v909 = vmax.f32 %v877, -128.0
        %v910 = vmax.f32 %v878, -128.0
        %v911 = vmax.f32 %v879, -128.0
        %v912 = vmax.f32 %v880, -128.0
        %v913 = vmax.f32 %v881, -128.0
        %v914 = vmax.f32 %v882, -128.0
        %v915 = vmax.f32 %v883, -128.0
        %v916 = vmax.f32 %v884, -128.0
        %v917 = vmax.f32 %v885, -128.0
        %v918 = vmax.f32 %v886, -128.0
        %v919 = vmax.f32 %v887, -128.0
        %v920 = vmax.f32 %v888, -128.0
        %v921 = vmax.f32 %v889, -128.0
        %v922 = vmax.f32 %v890, -128.0
        %v923 = vmax.f32 %v891, -128.0
        %v924 = vmax.f32 %v892, -128.0
        %v925 = vmax.f32 %v893, -128.0
        %v926 = vmax.f32 %v894, -128.0
        %v927 = vmax.f32 %v895, -128.0
        %v928 = vmax.f32 %v896, -128.0
        %v929 = vmax.f32 %v897, -128.0
        %v930 = vmax.f32 %v898, -128.0
        %v931 = vmax.f32 %v899, -128.0
        %v932 = vmin.f32 %v900, 127.0
        %v933 = vmin.f32 %v901, 127.0
        %v934 = vmin.f32 %v902, 127.0
        %v935 = vmin.f32 %v903, 127.0
        %v936 = vmin.f32 %v904, 127.0
        %v937 = vmin.f32 %v905, 127.0
        %v938 = vmin.f32 %v906, 127.0
        %v939 = vmin.f32 %v907, 127.0
        %v940 = vmin.f32 %v908, 127.0
        %v941 = vmin.f32 %v909, 127.0
        %v942 = vmin.f32 %v910, 127.0
        %v943 = vmin.f32 %v911, 127.0
        %v944 = vmin.f32 %v912, 127.0
        %v945 = vmin.f32 %v913, 127.0
        %v946 = vmin.f32 %v914, 127.0
        %v947 = vmin.f32 %v915, 127.0
        %v948 = vmin.f32 %v916, 127.0
        %v949 = vmin.f32 %v917, 127.0
        %v950 = vmin.f32 %v918, 127.0
        %v951 = vmin.f32 %v919, 127.0
        %v952 = vmin.f32 %v920, 127.0
        %v953 = vmin.f32 %v921, 127.0
        %v954 = vmin.f32 %v922, 127.0
        %v955 = vmin.f32 %v923, 127.0
        %v956 = vmin.f32 %v924, 127.0
        %v957 = vmin.f32 %v925, 127.0
        %v958 = vmin.f32 %v926, 127.0
        %v959 = vmin.f32 %v927, 127.0
        %v960 = vmin.f32 %v928, 127.0
        %v961 = vmin.f32 %v929, 127.0
        %v962 = vmin.f32 %v930, 127.0
        %v963 = vmin.f32 %v931, 127.0
        %v964 = vcvt.f32.s32.to.zero.pseudo %v932
        %v965 = vcvt.f32.s32.to.zero.pseudo %v933
        %v966 = vcvt.f32.s32.to.zero.pseudo %v934
        %v967 = vcvt.f32.s32.to.zero.pseudo %v935
        %v968 = vcvt.f32.s32.to.zero.pseudo %v936
        %v969 = vcvt.f32.s32.to.zero.pseudo %v937
        %v970 = vcvt.f32.s32.to.zero.pseudo %v938
        %v971 = vcvt.f32.s32.to.zero.pseudo %v939
        %v972 = vcvt.f32.s32.to.zero.pseudo %v940
        %v973 = vcvt.f32.s32.to.zero.pseudo %v941
        %v974 = vcvt.f32.s32.to.zero.pseudo %v942
        %v975 = vcvt.f32.s32.to.zero.pseudo %v943
        %v976 = vcvt.f32.s32.to.zero.pseudo %v944
        %v977 = vcvt.f32.s32.to.zero.pseudo %v945
        %v978 = vcvt.f32.s32.to.zero.pseudo %v946
        %v979 = vcvt.f32.s32.to.zero.pseudo %v947
        %v980 = vcvt.f32.s32.to.zero.pseudo %v948
        %v981 = vcvt.f32.s32.to.zero.pseudo %v949
        %v982 = vcvt.f32.s32.to.zero.pseudo %v950
        %v983 = vcvt.f32.s32.to.zero.pseudo %v951
        %v984 = vcvt.f32.s32.to.zero.pseudo %v952
        %v985 = vcvt.f32.s32.to.zero.pseudo %v953
        %v986 = vcvt.f32.s32.to.zero.pseudo %v954
        %v987 = vcvt.f32.s32.to.zero.pseudo %v955
        %v988 = vcvt.f32.s32.to.zero.pseudo %v956
        %v989 = vcvt.f32.s32.to.zero.pseudo %v957
        %v990 = vcvt.f32.s32.to.zero.pseudo %v958
        %v991 = vcvt.f32.s32.to.zero.pseudo %v959
        %v992 = vcvt.f32.s32.to.zero.pseudo %v960
        %v993 = vcvt.f32.s32.to.zero.pseudo %v961
        %v994 = vcvt.f32.s32.to.zero.pseudo %v962
        %v995 = vcvt.f32.s32.to.zero.pseudo %v963
        %v996 = vpack.c.b16 %v964, %v964
        %v997 = vpack.c.b8 %v996, %v996
        %v998 = vpack.c.b16 %v965, %v965
        %v999 = vpack.c.b8 %v998, %v998
        %v1000 = vpack.c.b16 %v966, %v966
        %v1001 = vpack.c.b8 %v1000, %v1000
        %v1002 = vpack.c.b16 %v967, %v967
        %v1003 = vpack.c.b8 %v1002, %v1002
        %v1004 = vpack.c.b16 %v968, %v968
        %v1005 = vpack.c.b8 %v1004, %v1004
        %v1006 = vpack.c.b16 %v969, %v969
        %v1007 = vpack.c.b8 %v1006, %v1006
        %v1008 = vpack.c.b16 %v970, %v970
        %v1009 = vpack.c.b8 %v1008, %v1008
        %v1010 = vpack.c.b16 %v971, %v971
        %v1011 = vpack.c.b8 %v1010, %v1010
        %v1012 = vpack.c.b16 %v972, %v972
        %v1013 = vpack.c.b8 %v1012, %v1012
        %v1014 = vpack.c.b16 %v973, %v973
        %v1015 = vpack.c.b8 %v1014, %v1014
        %v1016 = vpack.c.b16 %v974, %v974
        %v1017 = vpack.c.b8 %v1016, %v1016
        %v1018 = vpack.c.b16 %v975, %v975
        %v1019 = vpack.c.b8 %v1018, %v1018
        %v1020 = vpack.c.b16 %v976, %v976
        %v1021 = vpack.c.b8 %v1020, %v1020
        %v1022 = vpack.c.b16 %v977, %v977
        %v1023 = vpack.c.b8 %v1022, %v1022
        %v1024 = vpack.c.b16 %v978, %v978
        %v1025 = vpack.c.b8 %v1024, %v1024
        %v1026 = vpack.c.b16 %v979, %v979
        %v1027 = vpack.c.b8 %v1026, %v1026
        %v1028 = vpack.c.b16 %v980, %v980
        %v1029 = vpack.c.b8 %v1028, %v1028
        %v1030 = vpack.c.b16 %v981, %v981
        %v1031 = vpack.c.b8 %v1030, %v1030
        %v1032 = vpack.c.b16 %v982, %v982
        %v1033 = vpack.c.b8 %v1032, %v1032
        %v1034 = vpack.c.b16 %v983, %v983
        %v1035 = vpack.c.b8 %v1034, %v1034
        %v1036 = vpack.c.b16 %v984, %v984
        %v1037 = vpack.c.b8 %v1036, %v1036
        %v1038 = vpack.c.b16 %v985, %v985
        %v1039 = vpack.c.b8 %v1038, %v1038
        %v1040 = vpack.c.b16 %v986, %v986
        %v1041 = vpack.c.b8 %v1040, %v1040
        %v1042 = vpack.c.b16 %v987, %v987
        %v1043 = vpack.c.b8 %v1042, %v1042
        %v1044 = vpack.c.b16 %v988, %v988
        %v1045 = vpack.c.b8 %v1044, %v1044
        %v1046 = vpack.c.b16 %v989, %v989
        %v1047 = vpack.c.b8 %v1046, %v1046
        %v1048 = vpack.c.b16 %v990, %v990
        %v1049 = vpack.c.b8 %v1048, %v1048
        %v1050 = vpack.c.b16 %v991, %v991
        %v1051 = vpack.c.b8 %v1050, %v1050
        %v1052 = vpack.c.b16 %v992, %v992
        %v1053 = vpack.c.b8 %v1052, %v1052
        %v1054 = vpack.c.b16 %v993, %v993
        %v1055 = vpack.c.b8 %v1054, %v1054
        %v1056 = vpack.c.b16 %v994, %v994
        %v1057 = vpack.c.b8 %v1056, %v1056
        %v1058 = vpack.c.b16 %v995, %v995
        %v1059 = vpack.c.b8 %v1058, %v1058
        %vm1060 = vcmask 58368
        %1061 = vst.msk [vmem:[%s240] sm:$0x3] %vm1060, %v997
        %1062 = vst.msk [vmem:[%s240 + $0x2] sm:$0x3] %vm1060, %v999
        %1063 = vst.msk [vmem:[%s240 + $0x4] sm:$0x3] %vm1060, %v1001
        %1064 = vst.msk [vmem:[%s240 + $0x6] sm:$0x3] %vm1060, %v1003
        %1065 = vst.msk [vmem:[%s240 + $0x8] sm:$0x3] %vm1060, %v1005
        %1066 = vst.msk [vmem:[%s240 + $0xa] sm:$0x3] %vm1060, %v1007
        %1067 = vst.msk [vmem:[%s240 + $0xc] sm:$0x3] %vm1060, %v1009
        %1068 = vst.msk [vmem:[%s240 + $0xe] sm:$0x3] %vm1060, %v1011
        %1069 = vst.msk [vmem:[%s240 + $0x10] sm:$0x3] %vm1060, %v1013
        %1070 = vst.msk [vmem:[%s240 + $0x12] sm:$0x3] %vm1060, %v1015
        %1071 = vst.msk [vmem:[%s240 + $0x14] sm:$0x3] %vm1060, %v1017
        %1072 = vst.msk [vmem:[%s240 + $0x16] sm:$0x3] %vm1060, %v1019
        %1073 = vst.msk [vmem:[%s240 + $0x18] sm:$0x3] %vm1060, %v1021
        %1074 = vst.msk [vmem:[%s240 + $0x1a] sm:$0x3] %vm1060, %v1023
        %1075 = vst.msk [vmem:[%s240 + $0x1c] sm:$0x3] %vm1060, %v1025
        %1076 = vst.msk [vmem:[%s240 + $0x1e] sm:$0x3] %vm1060, %v1027
        %1077 = vst.msk [vmem:[%s240 + $0x20] sm:$0x3] %vm1060, %v1029
        %1078 = vst.msk [vmem:[%s240 + $0x22] sm:$0x3] %vm1060, %v1031
        %1079 = vst.msk [vmem:[%s240 + $0x24] sm:$0x3] %vm1060, %v1033
        %1080 = vst.msk [vmem:[%s240 + $0x26] sm:$0x3] %vm1060, %v1035
        %1081 = vst.msk [vmem:[%s240 + $0x28] sm:$0x3] %vm1060, %v1037
        %1082 = vst.msk [vmem:[%s240 + $0x2a] sm:$0x3] %vm1060, %v1039
        %1083 = vst.msk [vmem:[%s240 + $0x2c] sm:$0x3] %vm1060, %v1041
        %1084 = vst.msk [vmem:[%s240 + $0x2e] sm:$0x3] %vm1060, %v1043
        %1085 = vst.msk [vmem:[%s240 + $0x30] sm:$0x3] %vm1060, %v1045
        %1086 = vst.msk [vmem:[%s240 + $0x32] sm:$0x3] %vm1060, %v1047
        %1087 = vst.msk [vmem:[%s240 + $0x34] sm:$0x3] %vm1060, %v1049
        %1088 = vst.msk [vmem:[%s240 + $0x36] sm:$0x3] %vm1060, %v1051
        %1089 = vst.msk [vmem:[%s240 + $0x38] sm:$0x3] %vm1060, %v1053
        %1090 = vst.msk [vmem:[%s240 + $0x3a] sm:$0x3] %vm1060, %v1055
        %1091 = vst.msk [vmem:[%s240 + $0x3c] sm:$0x3] %vm1060, %v1057
        %1092 = vst.msk [vmem:[%s240 + $0x3e] sm:$0x3] %vm1060, %v1059
        %s1093 = smul.u32 32, %s17
        %p1094 = scmp.lt.s32.totalorder %s1093, 63
        %s1095 = scalar_select %p1094, %s1093, 63
        %s1096 = smul.addr %s1095, 2
        %s1097 = scalar_lea.vmem %s5, %s1096
        // Predicated region
        $region45: #{quant_model_forward.2} parent=39 // pred_check
          %p1098 = pneg %p145
        $region46: #{quant_model_forward.2} parent=39 // pred_check_branch
          %1100 = sbr.rel (%p1098) target = $region48
        $region47: #{quant_model_forward.2} parent=39 // pred_region
          %s1101 = smul.u32 32, %s17
        $region48: #{quant_model_forward.2} parent=39 // pred_fallthru
          _
      $region40: #{quant_model_forward.2} parent=5 // pred_fallthru
        _
      %p1102 = scmp.le.s32.totalorder 2, %s12
      // Predicated region
      $region49: #{quant_model_forward.2} parent=5 // pred_check
        %p1103 = pneg %p1102
      $region50: #{quant_model_forward.2} parent=5 // pred_check_branch
        %1105 = sbr.rel (%p1103) target = $region52
      $region51: #{quant_model_forward.2} parent=5 // pred_region
        %s1106 = ssub.s32 %s12, 2
        // Predicated region
        $region53: #{quant_model_forward.2} parent=51 // pred_check
          %p1107 = pneg %p151
        $region54: #{quant_model_forward.2} parent=51 // pred_check_branch
          %1109 = sbr.rel (%p1107) target = $region56
        $region55: #{quant_model_forward.2} parent=51 // pred_region
          %s1110 = smul.u32 32, %s18
          %p1111 = scmp.lt.s32.totalorder %s1110, 63
          %s1112 = scalar_select %p1111, %s1110, 63
          %s1113 = smul.addr %s1112, 2
          %s1114 = scalar_lea.vmem %s5, %s1113
        $region56: #{quant_model_forward.2} parent=51 // pred_fallthru
          _
      $region52: #{quant_model_forward.2} parent=5 // pred_fallthru
        _
    $region6: #{quant_model_forward.2} parent=1 // loop_footer
      %s16 = sadd.s32 1, %s12
    $region7: #{quant_model_forward.2} parent=1 // loop_footer_branch
      %11 = sbr.rel target = $region3
    $region8: #{quant_model_forward.2} parent=1 // loop_exit
      _
    %1115 = vsyncpa [#allocation3], 1
    %s1116 = scalar_lea.sflag [#allocation3], 1
    %1117 = vsyncpa %s1116, 1

// kernel: quant_model_forward.3
$region0: #{quant_model_forward.3}
  #allocation0 [shape = 'u32[]', space=smem, size = 0x4, offset = 0x4, fixed_abs, tag = 'smem constant byte address 0x4 - core index']
  #allocation1 [shape = 'u32[144,128]{1,0:T(1,128)}', space=vmem, size = 0x12000, scoped, tag = 'internal scratch']
  %s0 = inlined_call_operand.vmem [shape: s8[8,2048], index: 0, kind: input, shape index: {}]
  %s1 = inlined_call_operand.vmem [shape: s8[2048,128], index: 1, kind: input, shape index: {}]
  %s2 = inlined_call_operand.vmem [shape: f32[1,128], index: 2, kind: input, shape index: {}]
  %s3 = inlined_call_operand.vmem [shape: f32[1,128], index: 3, kind: input, shape index: {}]
  %s4 = inlined_call_operand.vmem [shape: f32[2], index: 4, kind: input, shape index: {}]
  %s5 = inlined_call_operand.vmem [shape: f32[8,128], index: 5, kind: output, shape index: {}]
  %s6 = sld [smem:[#allocation0]]
  $region34: #{quant_model_forward.3} parent=0
    _
  %s8 = ssub.s32 1, %s6
  %s9 = scalar_select 0, %s8, %s6
  $region1: #{quant_model_forward.3} parent=0
    #allocation2 [shape = 'u8[512]{0}', space=smem, size = 0x200, scoped, tag = 'input window, operand 4, single buffered']
    #allocation3 [shape = 's32[1]{0}', space=sflag, size = 0x4, scoped, tag = 'scoped memory for quant_model_forward.3']
    %10 = vsyncpa [#allocation3], 0
    // Predicated region
    $region2: #{quant_model_forward.3} parent=1 // pred_check
      _
    $region3: #{quant_model_forward.3} parent=1 // pred_check_branch
      %12 = sbr.rel (0) target = $region5
    $region4: #{quant_model_forward.3} parent=1 // pred_region
      _
    $region5: #{quant_model_forward.3} parent=1 // pred_fallthru
      _
    // Predicated region
    $region6: #{quant_model_forward.3} parent=1 // pred_check
      _
    $region7: #{quant_model_forward.3} parent=1 // pred_check_branch
      %14 = sbr.rel (0) target = $region9
    $region8: #{quant_model_forward.3} parent=1 // pred_region
      _
    $region9: #{quant_model_forward.3} parent=1 // pred_fallthru
      _
    // Predicated region
    $region10: #{quant_model_forward.3} parent=1 // pred_check
      _
    $region11: #{quant_model_forward.3} parent=1 // pred_check_branch
      %16 = sbr.rel (0) target = $region13
    $region12: #{quant_model_forward.3} parent=1 // pred_region
      _
    $region13: #{quant_model_forward.3} parent=1 // pred_fallthru
      _
    // Predicated region
    $region14: #{quant_model_forward.3} parent=1 // pred_check
      _
    $region15: #{quant_model_forward.3} parent=1 // pred_check_branch
      %18 = sbr.rel (0) target = $region17
    $region16: #{quant_model_forward.3} parent=1 // pred_region
      _
    $region17: #{quant_model_forward.3} parent=1 // pred_fallthru
      _
    // Predicated region
    $region18: #{quant_model_forward.3} parent=1 // pred_check
      _
    $region19: #{quant_model_forward.3} parent=1 // pred_check_branch
      %20 = sbr.rel (0) target = $region21
    $region20: #{quant_model_forward.3} parent=1 // pred_region
      %s22 = ssub.s32 16, 16
      %23 = vsyncadd [#allocation3], %s22
      %s25 = sshll.u32 %s4, 4
      %s26 = int_to_ptr.vmem [resolvable:$true] %s25
      %28 = dma.vmem_to_smem %s26, 16, [#allocation2], [#allocation3]
    $region21: #{quant_model_forward.3} parent=1 // pred_fallthru
      _
    // Predicated region
    $region22: #{quant_model_forward.3} parent=1 // pred_check
      _
    $region23: #{quant_model_forward.3} parent=1 // pred_check_branch
      %30 = sbr.rel (0) target = $region25
    $region24: #{quant_model_forward.3} parent=1 // pred_region
      %31 = dma.done [#allocation3], 16
    $region25: #{quant_model_forward.3} parent=1 // pred_fallthru
      _
    %32 = sfence
    %v34 = vld [vmem:[%s0] sm:$0xff]
    %v35 = vld [vmem:[%s0 + $0x8] sm:$0xff]
    %v36 = vld [vmem:[%s0 + $0x10] sm:$0xff]
    %v37 = vld [vmem:[%s0 + $0x18] sm:$0xff]
    %v38 = vunpack.c.l.s8.bf16 %v34
    %v39 = vunpack.c.h.s8.bf16 %v34
    %v40 = vunpack.c.l.s8.bf16 %v35
    %v41 = vunpack.c.h.s8.bf16 %v35
    %v42 = vunpack.c.l.s8.bf16 %v36
    %v43 = vunpack.c.h.s8.bf16 %v36
    %v44 = vunpack.c.l.s8.bf16 %v37
    %v45 = vunpack.c.h.s8.bf16 %v37
    %v46 = vld [vmem:[%s1] sm:$0xff]
    %v47 = vld [vmem:[%s1 + $0x8] sm:$0xff]
    %v48 = vld [vmem:[%s1 + $0x10] sm:$0xff]
    %v49 = vld [vmem:[%s1 + $0x18] sm:$0xff]
    %v50 = vld [vmem:[%s1 + $0x20] sm:$0xff]
    %v51 = vld [vmem:[%s1 + $0x28] sm:$0xff]
    %v52 = vld [vmem:[%s1 + $0x30] sm:$0xff]
    %v53 = vld [vmem:[%s1 + $0x38] sm:$0xff]
    %v54 = vld [vmem:[%s1 + $0x40] sm:$0xff]
    %v55 = vld [vmem:[%s1 + $0x48] sm:$0xff]
    %v56 = vld [vmem:[%s1 + $0x50] sm:$0xff]
    %v57 = vld [vmem:[%s1 + $0x58] sm:$0xff]
    %v58 = vld [vmem:[%s1 + $0x60] sm:$0xff]
    %v59 = vld [vmem:[%s1 + $0x68] sm:$0xff]
    %v60 = vld [vmem:[%s1 + $0x70] sm:$0xff]
    %v61 = vld [vmem:[%s1 + $0x78] sm:$0xff]
    %v62 = vld [vmem:[%s1 + $0x80] sm:$0xff]
    %v63 = vld [vmem:[%s1 + $0x88] sm:$0xff]
    %v64 = vld [vmem:[%s1 + $0x90] sm:$0xff]
    %v65 = vld [vmem:[%s1 + $0x98] sm:$0xff]
    %v66 = vld [vmem:[%s1 + $0xa0] sm:$0xff]
    %v67 = vld [vmem:[%s1 + $0xa8] sm:$0xff]
    %v68 = vld [vmem:[%s1 + $0xb0] sm:$0xff]
    %v69 = vld [vmem:[%s1 + $0xb8] sm:$0xff]
    %v70 = vld [vmem:[%s1 + $0xc0] sm:$0xff]
    %v71 = vld [vmem:[%s1 + $0xc8] sm:$0xff]
    %v72 = vld [vmem:[%s1 + $0xd0] sm:$0xff]
    %v73 = vld [vmem:[%s1 + $0xd8] sm:$0xff]
    %v74 = vld [vmem:[%s1 + $0xe0] sm:$0xff]
    %v75 = vld [vmem:[%s1 + $0xe8] sm:$0xff]
    %v76 = vld [vmem:[%s1 + $0xf0] sm:$0xff]
    %v77 = vld [vmem:[%s1 + $0xf8] sm:$0xff]
    %v78 = vld [vmem:[%s1 + $0x100] sm:$0xff]
    %v79 = vld [vmem:[%s1 + $0x108] sm:$0xff]
    %v80 = vld [vmem:[%s1 + $0x110] sm:$0xff]
    %v81 = vld [vmem:[%s1 + $0x118] sm:$0xff]
    %v82 = vld [vmem:[%s1 + $0x120] sm:$0xff]
    %v83 = vld [vmem:[%s1 + $0x128] sm:$0xff]
    %v84 = vld [vmem:[%s1 + $0x130] sm:$0xff]
    %v85 = vld [vmem:[%s1 + $0x138] sm:$0xff]
    %v86 = vld [vmem:[%s1 + $0x140] sm:$0xff]
    %v87 = vld [vmem:[%s1 + $0x148] sm:$0xff]
    %v88 = vld [vmem:[%s1 + $0x150] sm:$0xff]
    %v89 = vld [vmem:[%s1 + $0x158] sm:$0xff]
    %v90 = vld [vmem:[%s1 + $0x160] sm:$0xff]
    %v91 = vld [vmem:[%s1 + $0x168] sm:$0xff]
    %v92 = vld [vmem:[%s1 + $0x170] sm:$0xff]
    %v93 = vld [vmem:[%s1 + $0x178] sm:$0xff]
    %v94 = vld [vmem:[%s1 + $0x180] sm:$0xff]
    %v95 = vld [vmem:[%s1 + $0x188] sm:$0xff]
    %v96 = vld [vmem:[%s1 + $0x190] sm:$0xff]
    %v97 = vld [vmem:[%s1 + $0x198] sm:$0xff]
    %v98 = vld [vmem:[%s1 + $0x1a0] sm:$0xff]
    %v99 = vld [vmem:[%s1 + $0x1a8] sm:$0xff]
    %v100 = vld [vmem:[%s1 + $0x1b0] sm:$0xff]
    %v101 = vld [vmem:[%s1 + $0x1b8] sm:$0xff]
    %v102 = vld [vmem:[%s1 + $0x1c0] sm:$0xff]
    %v103 = vld [vmem:[%s1 + $0x1c8] sm:$0xff]
    %v104 = vld [vmem:[%s1 + $0x1d0] sm:$0xff]
    %v105 = vld [vmem:[%s1 + $0x1d8] sm:$0xff]
    %v106 = vld [vmem:[%s1 + $0x1e0] sm:$0xff]
    %v107 = vld [vmem:[%s1 + $0x1e8] sm:$0xff]
    %v108 = vld [vmem:[%s1 + $0x1f0] sm:$0xff]
    %v109 = vld [vmem:[%s1 + $0x1f8] sm:$0xff]
    %v110 = vunpack.c.l.s8.bf16 %v46
    %v111 = vunpack.c.h.s8.bf16 %v46
    %v112 = vunpack.c.l.s8.bf16 %v47
    %v113 = vunpack.c.h.s8.bf16 %v47
    %v114 = vunpack.c.l.s8.bf16 %v48
    %v115 = vunpack.c.h.s8.bf16 %v48
    %v116 = vunpack.c.l.s8.bf16 %v49
    %v117 = vunpack.c.h.s8.bf16 %v49
    %v118 = vunpack.c.l.s8.bf16 %v50
    %v119 = vunpack.c.h.s8.bf16 %v50
    %v120 = vunpack.c.l.s8.bf16 %v51
    %v121 = vunpack.c.h.s8.bf16 %v51
    %v122 = vunpack.c.l.s8.bf16 %v52
    %v123 = vunpack.c.h.s8.bf16 %v52
    %v124 = vunpack.c.l.s8.bf16 %v53
    %v125 = vunpack.c.h.s8.bf16 %v53
    %v126 = vunpack.c.l.s8.bf16 %v54
    %v127 = vunpack.c.h.s8.bf16 %v54
    %v128 = vunpack.c.l.s8.bf16 %v55
    %v129 = vunpack.c.h.s8.bf16 %v55
    %v130 = vunpack.c.l.s8.bf16 %v56
    %v131 = vunpack.c.h.s8.bf16 %v56
    %v132 = vunpack.c.l.s8.bf16 %v57
    %v133 = vunpack.c.h.s8.bf16 %v57
    %v134 = vunpack.c.l.s8.bf16 %v58
    %v135 = vunpack.c.h.s8.bf16 %v58
    %v136 = vunpack.c.l.s8.bf16 %v59
    %v137 = vunpack.c.h.s8.bf16 %v59
    %v138 = vunpack.c.l.s8.bf16 %v60
    %v139 = vunpack.c.h.s8.bf16 %v60
    %v140 = vunpack.c.l.s8.bf16 %v61
    %v141 = vunpack.c.h.s8.bf16 %v61
    %v142 = vunpack.c.l.s8.bf16 %v62
    %v143 = vunpack.c.h.s8.bf16 %v62
    %v144 = vunpack.c.l.s8.bf16 %v63
    %v145 = vunpack.c.h.s8.bf16 %v63
    %v146 = vunpack.c.l.s8.bf16 %v64
    %v147 = vunpack.c.h.s8.bf16 %v64
    %v148 = vunpack.c.l.s8.bf16 %v65
    %v149 = vunpack.c.h.s8.bf16 %v65
    %v150 = vunpack.c.l.s8.bf16 %v66
    %v151 = vunpack.c.h.s8.bf16 %v66
    %v152 = vunpack.c.l.s8.bf16 %v67
    %v153 = vunpack.c.h.s8.bf16 %v67
    %v154 = vunpack.c.l.s8.bf16 %v68
    %v155 = vunpack.c.h.s8.bf16 %v68
    %v156 = vunpack.c.l.s8.bf16 %v69
    %v157 = vunpack.c.h.s8.bf16 %v69
    %v158 = vunpack.c.l.s8.bf16 %v70
    %v159 = vunpack.c.h.s8.bf16 %v70
    %v160 = vunpack.c.l.s8.bf16 %v71
    %v161 = vunpack.c.h.s8.bf16 %v71
    %v162 = vunpack.c.l.s8.bf16 %v72
    %v163 = vunpack.c.h.s8.bf16 %v72
    %v164 = vunpack.c.l.s8.bf16 %v73
    %v165 = vunpack.c.h.s8.bf16 %v73
    %v166 = vunpack.c.l.s8.bf16 %v74
    %v167 = vunpack.c.h.s8.bf16 %v74
    %v168 = vunpack.c.l.s8.bf16 %v75
    %v169 = vunpack.c.h.s8.bf16 %v75
    %v170 = vunpack.c.l.s8.bf16 %v76
    %v171 = vunpack.c.h.s8.bf16 %v76
    %v172 = vunpack.c.l.s8.bf16 %v77
    %v173 = vunpack.c.h.s8.bf16 %v77
    %v174 = vunpack.c.l.s8.bf16 %v78
    %v175 = vunpack.c.h.s8.bf16 %v78
    %v176 = vunpack.c.l.s8.bf16 %v79
    %v177 = vunpack.c.h.s8.bf16 %v79
    %v178 = vunpack.c.l.s8.bf16 %v80
    %v179 = vunpack.c.h.s8.bf16 %v80
    %v180 = vunpack.c.l.s8.bf16 %v81
    %v181 = vunpack.c.h.s8.bf16 %v81
    %v182 = vunpack.c.l.s8.bf16 %v82
    %v183 = vunpack.c.h.s8.bf16 %v82
    %v184 = vunpack.c.l.s8.bf16 %v83
    %v185 = vunpack.c.h.s8.bf16 %v83
    %v186 = vunpack.c.l.s8.bf16 %v84
    %v187 = vunpack.c.h.s8.bf16 %v84
    %v188 = vunpack.c.l.s8.bf16 %v85
    %v189 = vunpack.c.h.s8.bf16 %v85
    %v190 = vunpack.c.l.s8.bf16 %v86
    %v191 = vunpack.c.h.s8.bf16 %v86
    %v192 = vunpack.c.l.s8.bf16 %v87
    %v193 = vunpack.c.h.s8.bf16 %v87
    %v194 = vunpack.c.l.s8.bf16 %v88
    %v195 = vunpack.c.h.s8.bf16 %v88
    %v196 = vunpack.c.l.s8.bf16 %v89
    %v197 = vunpack.c.h.s8.bf16 %v89
    %v198 = vunpack.c.l.s8.bf16 %v90
    %v199 = vunpack.c.h.s8.bf16 %v90
    %v200 = vunpack.c.l.s8.bf16 %v91
    %v201 = vunpack.c.h.s8.bf16 %v91
    %v202 = vunpack.c.l.s8.bf16 %v92
    %v203 = vunpack.c.h.s8.bf16 %v92
    %v204 = vunpack.c.l.s8.bf16 %v93
    %v205 = vunpack.c.h.s8.bf16 %v93
    %v206 = vunpack.c.l.s8.bf16 %v94
    %v207 = vunpack.c.h.s8.bf16 %v94
    %v208 = vunpack.c.l.s8.bf16 %v95
    %v209 = vunpack.c.h.s8.bf16 %v95
    %v210 = vunpack.c.l.s8.bf16 %v96
    %v211 = vunpack.c.h.s8.bf16 %v96
    %v212 = vunpack.c.l.s8.bf16 %v97
    %v213 = vunpack.c.h.s8.bf16 %v97
    %v214 = vunpack.c.l.s8.bf16 %v98
    %v215 = vunpack.c.h.s8.bf16 %v98
    %v216 = vunpack.c.l.s8.bf16 %v99
    %v217 = vunpack.c.h.s8.bf16 %v99
    %v218 = vunpack.c.l.s8.bf16 %v100
    %v219 = vunpack.c.h.s8.bf16 %v100
    %v220 = vunpack.c.l.s8.bf16 %v101
    %v221 = vunpack.c.h.s8.bf16 %v101
    %v222 = vunpack.c.l.s8.bf16 %v102
    %v223 = vunpack.c.h.s8.bf16 %v102
    %v224 = vunpack.c.l.s8.bf16 %v103
    %v225 = vunpack.c.h.s8.bf16 %v103
    %v226 = vunpack.c.l.s8.bf16 %v104
    %v227 = vunpack.c.h.s8.bf16 %v104
    %v228 = vunpack.c.l.s8.bf16 %v105
    %v229 = vunpack.c.h.s8.bf16 %v105
    %v230 = vunpack.c.l.s8.bf16 %v106
    %v231 = vunpack.c.h.s8.bf16 %v106
    %v232 = vunpack.c.l.s8.bf16 %v107
    %v233 = vunpack.c.h.s8.bf16 %v107
    %v234 = vunpack.c.l.s8.bf16 %v108
    %v235 = vunpack.c.h.s8.bf16 %v108
    %v236 = vunpack.c.l.s8.bf16 %v109
    %v237 = vunpack.c.h.s8.bf16 %v109
    %v246 = vunpack.c.l.b16 %v38
    %v247 = vunpack.c.h.b16 %v38
    %v248 = vunpack.c.l.b16 %v39
    %v249 = vunpack.c.h.b16 %v39
    %v250 = vunpack.c.l.b16 %v40
    %v251 = vunpack.c.h.b16 %v40
    %v252 = vunpack.c.l.b16 %v41
    %v253 = vunpack.c.h.b16 %v41
    %v254 = vunpack.c.l.b16 %v42
    %v255 = vunpack.c.h.b16 %v42
    %v256 = vunpack.c.l.b16 %v43
    %v257 = vunpack.c.h.b16 %v43
    %v258 = vunpack.c.l.b16 %v44
    %v259 = vunpack.c.h.b16 %v44
    %v260 = vunpack.c.l.b16 %v45
    %v261 = vunpack.c.h.b16 %v45
    %v262 = vpack.c.b16 %v246, %v246
    %v263 = vpack.c.b16 %v247, %v247
    %v264 = vpack.c.b16 %v248, %v248
    %v265 = vpack.c.b16 %v249, %v249
    %v266 = vpack.c.b16 %v250, %v250
    %v267 = vpack.c.b16 %v251, %v251
    %v268 = vpack.c.b16 %v252, %v252
    %v269 = vpack.c.b16 %v253, %v253
    %v270 = vpack.c.b16 %v254, %v254
    %v271 = vpack.c.b16 %v255, %v255
    %v272 = vpack.c.b16 %v256, %v256
    %v273 = vpack.c.b16 %v257, %v257
    %v274 = vpack.c.b16 %v258, %v258
    %v275 = vpack.c.b16 %v259, %v259
    %v276 = vpack.c.b16 %v260, %v260
    %v277 = vpack.c.b16 %v261, %v261
    %294 = vmatprep.subr.bf16.mxu0 0
    %295 = vmatpush1.bf16.msra.mxu0 %v117
    %296 = vmatprep.subr.bf16.mxu0 0
    %297 = vmatpush1.bf16.msra.mxu0 %v116
    %298 = vmatprep.subr.bf16.mxu0 0
    %299 = vmatpush1.bf16.msra.mxu0 %v115
    %300 = vmatprep.subr.bf16.mxu0 0
    %301 = vmatpush1.bf16.msra.mxu0 %v114
    %302 = vmatprep.subr.bf16.mxu0 0
    %303 = vmatpush1.bf16.msra.mxu0 %v113
    %304 = vmatprep.subr.bf16.mxu0 0
    %305 = vmatpush1.bf16.msra.mxu0 %v112
    %306 = vmatprep.subr.bf16.mxu0 0
    %307 = vmatpush1.bf16.msra.mxu0 %v111
    %308 = vmatprep.subr.bf16.mxu0 0
    %309 = vmatpush1.bf16.msra.mxu0 %v110
    %310 = vmatprep.subr.bf16.mxu0 0
    %311 = vmatpush2.bf16.msra.mxu0 %v125
    %312 = vmatprep.subr.bf16.mxu0 0
    %313 = vmatpush2.bf16.msra.mxu0 %v124
    %314 = vmatprep.subr.bf16.mxu0 0
    %315 = vmatpush2.bf16.msra.mxu0 %v123
    %316 = vmatprep.subr.bf16.mxu0 0
    %317 = vmatpush2.bf16.msra.mxu0 %v122
    %318 = vmatprep.subr.bf16.mxu0 0
    %319 = vmatpush2.bf16.msra.mxu0 %v121
    %320 = vmatprep.subr.bf16.mxu0 0
    %321 = vmatpush2.bf16.msra.mxu0 %v120
    %322 = vmatprep.subr.bf16.mxu0 0
    %323 = vmatpush2.bf16.msra.mxu0 %v119
    %324 = vmatprep.subr.bf16.mxu0 0
    %325 = vmatpush2.bf16.msra.mxu0 %v118
    %326 = vmatprep.mubr.bf16.mxu0 %v263
    %327 = vmatmul.mubr.bf16.gmra.mxu0 %v262
    %v328 = vpop.f32.mrf.mxu0
    %v329 = vadd.f32 0.0, %v328
    %v330 = vpop.f32.mrf.mxu0
    %v331 = vpop.f32.mrf.mxu0
    %v332 = vpop.f32.mrf.mxu0
    %333 = vdwg.mxu0
    %334 = vmatprep.subr.bf16.mxu0 0
    %335 = vmatpush1.bf16.msra.mxu0 %v133
    %336 = vmatprep.subr.bf16.mxu0 0
    %337 = vmatpush1.bf16.msra.mxu0 %v132
    %338 = vmatprep.subr.bf16.mxu0 0
    %339 = vmatpush1.bf16.msra.mxu0 %v131
    %340 = vmatprep.subr.bf16.mxu0 0
    %341 = vmatpush1.bf16.msra.mxu0 %v130
    %342 = vmatprep.subr.bf16.mxu0 0
    %343 = vmatpush1.bf16.msra.mxu0 %v129
    %344 = vmatprep.subr.bf16.mxu0 0
    %345 = vmatpush1.bf16.msra.mxu0 %v128
    %346 = vmatprep.subr.bf16.mxu0 0
    %347 = vmatpush1.bf16.msra.mxu0 %v127
    %348 = vmatprep.subr.bf16.mxu0 0
    %349 = vmatpush1.bf16.msra.mxu0 %v126
    %350 = vmatprep.subr.bf16.mxu0 0
    %351 = vmatpush2.bf16.msra.mxu0 %v141
    %352 = vmatprep.subr.bf16.mxu0 0
    %353 = vmatpush2.bf16.msra.mxu0 %v140
    %354 = vmatprep.subr.bf16.mxu0 0
    %355 = vmatpush2.bf16.msra.mxu0 %v139
    %356 = vmatprep.subr.bf16.mxu0 0
    %357 = vmatpush2.bf16.msra.mxu0 %v138
    %358 = vmatprep.subr.bf16.mxu0 0
    %359 = vmatpush2.bf16.msra.mxu0 %v137
    %360 = vmatprep.subr.bf16.mxu0 0
    %361 = vmatpush2.bf16.msra.mxu0 %v136
    %362 = vmatprep.subr.bf16.mxu0 0
    %363 = vmatpush2.bf16.msra.mxu0 %v135
    %364 = vmatprep.subr.bf16.mxu0 0
    %365 = vmatpush2.bf16.msra.mxu0 %v134
    %366 = vmatprep.mubr.bf16.mxu0 %v265
    %367 = vmatmul.mubr.bf16.gmra.mxu0 %v264
    %v368 = vpop.f32.mrf.mxu0
    %v369 = vadd.f32 %v329, %v368
    %v370 = vpop.f32.mrf.mxu0
    %v371 = vpop.f32.mrf.mxu0
    %v372 = vpop.f32.mrf.mxu0
    %373 = vdwg.mxu0
    %374 = vmatprep.subr.bf16.mxu0 0
    %375 = vmatpush1.bf16.msra.mxu0 %v149
    %376 = vmatprep.subr.bf16.mxu0 0
    %377 = vmatpush1.bf16.msra.mxu0 %v148
    %378 = vmatprep.subr.bf16.mxu0 0
    %379 = vmatpush1.bf16.msra.mxu0 %v147
    %380 = vmatprep.subr.bf16.mxu0 0
    %381 = vmatpush1.bf16.msra.mxu0 %v146
    %382 = vmatprep.subr.bf16.mxu0 0
    %383 = vmatpush1.bf16.msra.mxu0 %v145
    %384 = vmatprep.subr.bf16.mxu0 0
    %385 = vmatpush1.bf16.msra.mxu0 %v144
    %386 = vmatprep.subr.bf16.mxu0 0
    %387 = vmatpush1.bf16.msra.mxu0 %v143
    %388 = vmatprep.subr.bf16.mxu0 0
    %389 = vmatpush1.bf16.msra.mxu0 %v142
    %390 = vmatprep.subr.bf16.mxu0 0
    %391 = vmatpush2.bf16.msra.mxu0 %v157
    %392 = vmatprep.subr.bf16.mxu0 0
    %393 = vmatpush2.bf16.msra.mxu0 %v156
    %394 = vmatprep.subr.bf16.mxu0 0
    %395 = vmatpush2.bf16.msra.mxu0 %v155
    %396 = vmatprep.subr.bf16.mxu0 0
    %397 = vmatpush2.bf16.msra.mxu0 %v154
    %398 = vmatprep.subr.bf16.mxu0 0
    %399 = vmatpush2.bf16.msra.mxu0 %v153
    %400 = vmatprep.subr.bf16.mxu0 0
    %401 = vmatpush2.bf16.msra.mxu0 %v152
    %402 = vmatprep.subr.bf16.mxu0 0
    %403 = vmatpush2.bf16.msra.mxu0 %v151
    %404 = vmatprep.subr.bf16.mxu0 0
    %405 = vmatpush2.bf16.msra.mxu0 %v150
    %406 = vmatprep.mubr.bf16.mxu0 %v267
    %407 = vmatmul.mubr.bf16.gmra.mxu0 %v266
    %v408 = vpop.f32.mrf.mxu0
    %v409 = vadd.f32 %v369, %v408
    %v410 = vpop.f32.mrf.mxu0
    %v411 = vpop.f32.mrf.mxu0
    %v412 = vpop.f32.mrf.mxu0
    %413 = vdwg.mxu0
    %414 = vmatprep.subr.bf16.mxu0 0
    %415 = vmatpush1.bf16.msra.mxu0 %v165
    %416 = vmatprep.subr.bf16.mxu0 0
    %417 = vmatpush1.bf16.msra.mxu0 %v164
    %418 = vmatprep.subr.bf16.mxu0 0
    %419 = vmatpush1.bf16.msra.mxu0 %v163
    %420 = vmatprep.subr.bf16.mxu0 0
    %421 = vmatpush1.bf16.msra.mxu0 %v162
    %422 = vmatprep.subr.bf16.mxu0 0
    %423 = vmatpush1.bf16.msra.mxu0 %v161
    %424 = vmatprep.subr.bf16.mxu0 0
    %425 = vmatpush1.bf16.msra.mxu0 %v160
    %426 = vmatprep.subr.bf16.mxu0 0
    %427 = vmatpush1.bf16.msra.mxu0 %v159
    %428 = vmatprep.subr.bf16.mxu0 0
    %429 = vmatpush1.bf16.msra.mxu0 %v158
    %430 = vmatprep.subr.bf16.mxu0 0
    %431 = vmatpush2.bf16.msra.mxu0 %v173
    %432 = vmatprep.subr.bf16.mxu0 0
    %433 = vmatpush2.bf16.msra.mxu0 %v172
    %434 = vmatprep.subr.bf16.mxu0 0
    %435 = vmatpush2.bf16.msra.mxu0 %v171
    %436 = vmatprep.subr.bf16.mxu0 0
    %437 = vmatpush2.bf16.msra.mxu0 %v170
    %438 = vmatprep.subr.bf16.mxu0 0
    %439 = vmatpush2.bf16.msra.mxu0 %v169
    %440 = vmatprep.subr.bf16.mxu0 0
    %441 = vmatpush2.bf16.msra.mxu0 %v168
    %442 = vmatprep.subr.bf16.mxu0 0
    %443 = vmatpush2.bf16.msra.mxu0 %v167
    %444 = vmatprep.subr.bf16.mxu0 0
    %445 = vmatpush2.bf16.msra.mxu0 %v166
    %446 = vmatprep.mubr.bf16.mxu0 %v269
    %447 = vmatmul.mubr.bf16.gmra.mxu0 %v268
    %v448 = vpop.f32.mrf.mxu0
    %v449 = vadd.f32 %v409, %v448
    %v450 = vpop.f32.mrf.mxu0
    %v451 = vpop.f32.mrf.mxu0
    %v452 = vpop.f32.mrf.mxu0
    %453 = vdwg.mxu0
    %454 = vmatprep.subr.bf16.mxu0 0
    %455 = vmatpush1.bf16.msra.mxu0 %v181
    %456 = vmatprep.subr.bf16.mxu0 0
    %457 = vmatpush1.bf16.msra.mxu0 %v180
    %458 = vmatprep.subr.bf16.mxu0 0
    %459 = vmatpush1.bf16.msra.mxu0 %v179
    %460 = vmatprep.subr.bf16.mxu0 0
    %461 = vmatpush1.bf16.msra.mxu0 %v178
    %462 = vmatprep.subr.bf16.mxu0 0
    %463 = vmatpush1.bf16.msra.mxu0 %v177
    %464 = vmatprep.subr.bf16.mxu0 0
    %465 = vmatpush1.bf16.msra.mxu0 %v176
    %466 = vmatprep.subr.bf16.mxu0 0
    %467 = vmatpush1.bf16.msra.mxu0 %v175
    %468 = vmatprep.subr.bf16.mxu0 0
    %469 = vmatpush1.bf16.msra.mxu0 %v174
    %470 = vmatprep.subr.bf16.mxu0 0
    %471 = vmatpush2.bf16.msra.mxu0 %v189
    %472 = vmatprep.subr.bf16.mxu0 0
    %473 = vmatpush2.bf16.msra.mxu0 %v188
    %474 = vmatprep.subr.bf16.mxu0 0
    %475 = vmatpush2.bf16.msra.mxu0 %v187
    %476 = vmatprep.subr.bf16.mxu0 0
    %477 = vmatpush2.bf16.msra.mxu0 %v186
    %478 = vmatprep.subr.bf16.mxu0 0
    %479 = vmatpush2.bf16.msra.mxu0 %v185
    %480 = vmatprep.subr.bf16.mxu0 0
    %481 = vmatpush2.bf16.msra.mxu0 %v184
    %482 = vmatprep.subr.bf16.mxu0 0
    %483 = vmatpush2.bf16.msra.mxu0 %v183
    %484 = vmatprep.subr.bf16.mxu0 0
    %485 = vmatpush2.bf16.msra.mxu0 %v182
    %486 = vmatprep.mubr.bf16.mxu0 %v271
    %487 = vmatmul.mubr.bf16.gmra.mxu0 %v270
    %v488 = vpop.f32.mrf.mxu0
    %v489 = vadd.f32 %v449, %v488
    %v490 = vpop.f32.mrf.mxu0
    %v491 = vpop.f32.mrf.mxu0
    %v492 = vpop.f32.mrf.mxu0
    %493 = vdwg.mxu0
    %494 = vmatprep.subr.bf16.mxu0 0
    %495 = vmatpush1.bf16.msra.mxu0 %v197
    %496 = vmatprep.subr.bf16.mxu0 0
    %497 = vmatpush1.bf16.msra.mxu0 %v196
    %498 = vmatprep.subr.bf16.mxu0 0
    %499 = vmatpush1.bf16.msra.mxu0 %v195
    %500 = vmatprep.subr.bf16.mxu0 0
    %501 = vmatpush1.bf16.msra.mxu0 %v194
    %502 = vmatprep.subr.bf16.mxu0 0
    %503 = vmatpush1.bf16.msra.mxu0 %v193
    %504 = vmatprep.subr.bf16.mxu0 0
    %505 = vmatpush1.bf16.msra.mxu0 %v192
    %506 = vmatprep.subr.bf16.mxu0 0
    %507 = vmatpush1.bf16.msra.mxu0 %v191
    %508 = vmatprep.subr.bf16.mxu0 0
    %509 = vmatpush1.bf16.msra.mxu0 %v190
    %510 = vmatprep.subr.bf16.mxu0 0
    %511 = vmatpush2.bf16.msra.mxu0 %v205
    %512 = vmatprep.subr.bf16.mxu0 0
    %513 = vmatpush2.bf16.msra.mxu0 %v204
    %514 = vmatprep.subr.bf16.mxu0 0
    %515 = vmatpush2.bf16.msra.mxu0 %v203
    %516 = vmatprep.subr.bf16.mxu0 0
    %517 = vmatpush2.bf16.msra.mxu0 %v202
    %518 = vmatprep.subr.bf16.mxu0 0
    %519 = vmatpush2.bf16.msra.mxu0 %v201
    %520 = vmatprep.subr.bf16.mxu0 0
    %521 = vmatpush2.bf16.msra.mxu0 %v200
    %522 = vmatprep.subr.bf16.mxu0 0
    %523 = vmatpush2.bf16.msra.mxu0 %v199
    %524 = vmatprep.subr.bf16.mxu0 0
    %525 = vmatpush2.bf16.msra.mxu0 %v198
    %526 = vmatprep.mubr.bf16.mxu0 %v273
    %527 = vmatmul.mubr.bf16.gmra.mxu0 %v272
    %v528 = vpop.f32.mrf.mxu0
    %v529 = vadd.f32 %v489, %v528
    %v530 = vpop.f32.mrf.mxu0
    %v531 = vpop.f32.mrf.mxu0
    %v532 = vpop.f32.mrf.mxu0
    %533 = vdwg.mxu0
    %534 = vmatprep.subr.bf16.mxu0 0
    %535 = vmatpush1.bf16.msra.mxu0 %v213
    %536 = vmatprep.subr.bf16.mxu0 0
    %537 = vmatpush1.bf16.msra.mxu0 %v212
    %538 = vmatprep.subr.bf16.mxu0 0
    %539 = vmatpush1.bf16.msra.mxu0 %v211
    %540 = vmatprep.subr.bf16.mxu0 0
    %541 = vmatpush1.bf16.msra.mxu0 %v210
    %542 = vmatprep.subr.bf16.mxu0 0
    %543 = vmatpush1.bf16.msra.mxu0 %v209
    %544 = vmatprep.subr.bf16.mxu0 0
    %545 = vmatpush1.bf16.msra.mxu0 %v208
    %546 = vmatprep.subr.bf16.mxu0 0
    %547 = vmatpush1.bf16.msra.mxu0 %v207
    %548 = vmatprep.subr.bf16.mxu0 0
    %549 = vmatpush1.bf16.msra.mxu0 %v206
    %550 = vmatprep.subr.bf16.mxu0 0
    %551 = vmatpush2.bf16.msra.mxu0 %v221
    %552 = vmatprep.subr.bf16.mxu0 0
    %553 = vmatpush2.bf16.msra.mxu0 %v220
    %554 = vmatprep.subr.bf16.mxu0 0
    %555 = vmatpush2.bf16.msra.mxu0 %v219
    %556 = vmatprep.subr.bf16.mxu0 0
    %557 = vmatpush2.bf16.msra.mxu0 %v218
    %558 = vmatprep.subr.bf16.mxu0 0
    %559 = vmatpush2.bf16.msra.mxu0 %v217
    %560 = vmatprep.subr.bf16.mxu0 0
    %561 = vmatpush2.bf16.msra.mxu0 %v216
    %562 = vmatprep.subr.bf16.mxu0 0
    %563 = vmatpush2.bf16.msra.mxu0 %v215
    %564 = vmatprep.subr.bf16.mxu0 0
    %565 = vmatpush2.bf16.msra.mxu0 %v214
    %566 = vmatprep.mubr.bf16.mxu0 %v275
    %567 = vmatmul.mubr.bf16.gmra.mxu0 %v274
    %v568 = vpop.f32.mrf.mxu0
    %v569 = vadd.f32 %v529, %v568
    %v570 = vpop.f32.mrf.mxu0
    %v571 = vpop.f32.mrf.mxu0
    %v572 = vpop.f32.mrf.mxu0
    %573 = vdwg.mxu0
    %574 = vmatprep.subr.bf16.mxu0 0
    %575 = vmatpush1.bf16.msra.mxu0 %v229
    %576 = vmatprep.subr.bf16.mxu0 0
    %577 = vmatpush1.bf16.msra.mxu0 %v228
    %578 = vmatprep.subr.bf16.mxu0 0
    %579 = vmatpush1.bf16.msra.mxu0 %v227
    %580 = vmatprep.subr.bf16.mxu0 0
    %581 = vmatpush1.bf16.msra.mxu0 %v226
    %582 = vmatprep.subr.bf16.mxu0 0
    %583 = vmatpush1.bf16.msra.mxu0 %v225
    %584 = vmatprep.subr.bf16.mxu0 0
    %585 = vmatpush1.bf16.msra.mxu0 %v224
    %586 = vmatprep.subr.bf16.mxu0 0
    %587 = vmatpush1.bf16.msra.mxu0 %v223
    %588 = vmatprep.subr.bf16.mxu0 0
    %589 = vmatpush1.bf16.msra.mxu0 %v222
    %590 = vmatprep.subr.bf16.mxu0 0
    %591 = vmatpush2.bf16.msra.mxu0 %v237
    %592 = vmatprep.subr.bf16.mxu0 0
    %593 = vmatpush2.bf16.msra.mxu0 %v236
    %594 = vmatprep.subr.bf16.mxu0 0
    %595 = vmatpush2.bf16.msra.mxu0 %v235
    %596 = vmatprep.subr.bf16.mxu0 0
    %597 = vmatpush2.bf16.msra.mxu0 %v234
    %598 = vmatprep.subr.bf16.mxu0 0
    %599 = vmatpush2.bf16.msra.mxu0 %v233
    %600 = vmatprep.subr.bf16.mxu0 0
    %601 = vmatpush2.bf16.msra.mxu0 %v232
    %602 = vmatprep.subr.bf16.mxu0 0
    %603 = vmatpush2.bf16.msra.mxu0 %v231
    %604 = vmatprep.subr.bf16.mxu0 0
    %605 = vmatpush2.bf16.msra.mxu0 %v230
    %606 = vmatprep.mubr.bf16.mxu0 %v277
    %607 = vmatmul.mubr.bf16.gmra.mxu0 %v276
    %v608 = vpop.f32.mrf.mxu0
    %v609 = vadd.f32 %v569, %v608
    %v610 = vpop.f32.mrf.mxu0
    %v611 = vpop.f32.mrf.mxu0
    %v612 = vpop.f32.mrf.mxu0
    %613 = vdwg.mxu0
    %v614 = vld [vmem:[%s3] sm:$0x1]
    %v616 = vlaneseq
    %v617 = vshrl.u32 %v616, 7
    %v618 = vsub.s32 0, %v617
    %v619 = vrot.slane %v614, %v618
    %v621 = vmul.f32 %v609, %v619
    %v622 = vld [vmem:[%s2] sm:$0x1]
    %v624 = vlaneseq
    %v625 = vshrl.u32 %v624, 7
    %v626 = vsub.s32 0, %v625
    %v627 = vrot.slane %v622, %v626
    %v629 = vadd.f32 %v621, %v627
    %630 = vst [vmem:[%s5] sm:$0xff] %v629
    // Predicated region
    $region26: #{quant_model_forward.3} parent=1 // pred_check
      _
    $region27: #{quant_model_forward.3} parent=1 // pred_check_branch
      %632 = sbr.rel (0) target = $region29
    $region28: #{quant_model_forward.3} parent=1 // pred_region
      _
    $region29: #{quant_model_forward.3} parent=1 // pred_fallthru
      _
    // Predicated region
    $region30: #{quant_model_forward.3} parent=1 // pred_check
      _
    $region31: #{quant_model_forward.3} parent=1 // pred_check_branch
      %634 = sbr.rel (0) target = $region33
    $region32: #{quant_model_forward.3} parent=1 // pred_region
      _
    $region33: #{quant_model_forward.3} parent=1 // pred_fallthru
      _
    %635 = vsyncpa [#allocation3], 1

</llo_original>
